<compile_context>
chip_gen: v6e
topology: v6e:2x2x1
jax: 0.10.0
libtpu: 0.0.40
codegen_flags: <defaults>
</compile_context>

<pallas_src>
import functools

import jax
import jax.numpy as jnp
from jax.experimental import pallas as pl
from jax.experimental.pallas import tpu as pltpu


# ---------------------------------------------------------------------------
# Fused pre-activation conv kernel:
#   out = conv3x3(relu(x*scale+shift), stride s) [+ residual]  [, 1x1 shortcut conv]
# ---------------------------------------------------------------------------

def _make_fused_conv_kernel(s, Ho, Wo, Cin, Cout, mm_meta, has_shortcut, has_residual):
    """Kernel factory.

    Activations arrive phase-decomposed and row-flattened: phases[t], t = py*s + px,
    holds the sub-image of x whose zero-padded (pad=1) coordinate is congruent to
    (py, px) mod s, with each image row flattened to (w, ci) -> Wo*Cin lanes.

    The 3x3 conv is len(mm_meta) row-band MXU matmuls (Ho, Wo*Cin) @ (Wo*Cin, Wo*Cout)
    against banded weight matrices (see _fold_conv_weights).  Column (dw) taps and the
    left/right zero padding are folded into the weight bands, so the only in-kernel data
    movement is a contiguous sublane-offset row-band slice per matmul, and the result is
    already lane-dense.
    """
    rhalo = 2 // s                       # vertical zero-pad rows held in the scratch
    Hp = Ho + rhalo
    WC = Wo * Cin
    NOut = Wo * Cout
    sc_phase = (1 % s) * s + (1 % s)     # phase holding the (1,1) tap for the 1x1 shortcut
    sc_q0 = 1 // s

    def kernel(*refs):
        i = 0
        ph_ref = refs[i]; i += 1            # (s*s, 1, Ho, Wo*Cin)    f32 / bf16
        scale_ref = refs[i]; i += 1         # (1, Wo*Cin)             f32 (pre-tiled)
        shift_ref = refs[i]; i += 1         # (1, Wo*Cin)             f32 (pre-tiled)
        w_ref = refs[i]; i += 1             # (n_mm, Wo*Cin, Wo*Cout) bf16 banded weights
        wsc_ref = None
        res_ref = None
        if has_shortcut:
            wsc_ref = refs[i]; i += 1       # (Wo*Cin, Wo*Cout)       bf16 banded 1x1
        if has_residual:
            res_ref = refs[i]; i += 1       # (1, Ho, Wo*Cout)
        out_ref = refs[i]; i += 1           # (1, Ho, Wo*Cout)
        sc_out_ref = None
        if has_shortcut:
            sc_out_ref = refs[i]; i += 1    # (1, Ho, Wo*Cout)
        apad = refs[i]                      # (s*s, Ho+rhalo, Wo*Cin) bf16 scratch

        scale = scale_ref[...]
        shift = shift_ref[...]

        # Fused BN + ReLU prologue into the bf16 VMEM scratch (cast once, stays on-chip).
        # Only the thin top/bottom halo rows are zeroed; the interior is fully rewritten
        # every grid step, so no full-frame clear and megacore-safe under "parallel".
        for py in range(s):
            r0 = 1 if py == 0 else 0
            for px in range(s):
                t = py * s + px
                a = jnp.maximum(ph_ref[t, 0] * scale + shift, 0.0)
                apad[t, r0:r0 + Ho, :] = a.astype(jnp.bfloat16)
                if r0 > 0:
                    apad[t, 0:r0, :] = jnp.zeros((r0, WC), jnp.bfloat16)
                if r0 + Ho < Hp:
                    apad[t, r0 + Ho:Hp, :] = jnp.zeros((Hp - r0 - Ho, WC), jnp.bfloat16)

        # 3x3 conv: a few deep MXU matmuls (K = Wo*Cin, N = Wo*Cout, f32 accumulation).
        acc = jnp.zeros((Ho, NOut), jnp.float32)
        for m, (t, q0) in enumerate(mm_meta):
            acc = acc + jnp.dot(apad[t, q0:q0 + Ho, :], w_ref[m],
                                preferred_element_type=jnp.float32)
        if has_residual:
            acc = acc + res_ref[0].astype(jnp.float32)     # fused residual-add epilogue
        out_ref[...] = acc[None].astype(out_ref.dtype)     # lane-dense (Wo*Cout) store

        if has_shortcut:
            # 1x1 stride-s shortcut conv of relu(bn1(x)): one extra matmul off the same
            # activated scratch (block-diagonal banded weights).
            sc = jnp.dot(apad[sc_phase, sc_q0:sc_q0 + Ho, :], wsc_ref[...],
                         preferred_element_type=jnp.float32)
            sc_out_ref[...] = sc[None].astype(sc_out_ref.dtype)

    return kernel


def _fused_pre_act_conv(phases, scale_t, shift_t, w_mm, mm_meta, *, Cin,
                        wsc_mm=None, res=None, stride=1, out_dtype=jnp.float32):
    """pallas_call wrapper.  phases: (s*s, N, Ho, Wo*Cin), row-flattened & lane-dense."""
    s = stride
    n_ph, N, Ho, WoC = phases.shape
    assert n_ph == s * s and WoC % Cin == 0
    Wo = WoC // Cin
    NOut = w_mm.shape[-1]
    n_mm = w_mm.shape[0]
    Cout = NOut // Wo
    assert n_mm == len(mm_meta)
    has_shortcut = wsc_mm is not None
    has_residual = res is not None

    kernel = _make_fused_conv_kernel(s, Ho, Wo, Cin, Cout, mm_meta,
                                     has_shortcut, has_residual)

    in_specs = [
        pl.BlockSpec((n_ph, 1, Ho, WoC), lambda n: (0, n, 0, 0)),
        pl.BlockSpec((1, WoC), lambda n: (0, 0)),
        pl.BlockSpec((1, WoC), lambda n: (0, 0)),
        # Grid-invariant weights: constant index map -> block is reused across steps.
        # TODO(synk): pipeline_mode=pl.Buffered(1) would drop the second buffer at wide
        # stages where the weight slab dominates VMEM (v7x 64 MiB budget).
        pl.BlockSpec((n_mm, WoC, NOut), lambda n: (0, 0, 0)),
    ]
    inputs = [phases, scale_t, shift_t, w_mm]
    if has_shortcut:
        in_specs.append(pl.BlockSpec((WoC, NOut), lambda n: (0, 0)))
        inputs.append(wsc_mm)
    if has_residual:
        in_specs.append(pl.BlockSpec((1, Ho, NOut), lambda n: (n, 0, 0)))
        inputs.append(res)

    out_block = pl.BlockSpec((1, Ho, NOut), lambda n: (n, 0, 0))
    out_sds = jax.ShapeDtypeStruct((N, Ho, NOut), out_dtype)
    if has_shortcut:
        out_specs = (out_block, out_block)
        out_shape = (out_sds, out_sds)
    else:
        out_specs = out_block
        out_shape = out_sds

    scratch_shapes = [pltpu.VMEM((s * s, Ho + 2 // s, WoC), jnp.bfloat16)]

    return pl.pallas_call(
        kernel,
        grid=(N,),
        in_specs=in_specs,
        out_specs=out_specs,
        out_shape=out_shape,
        scratch_shapes=scratch_shapes,
        compiler_params=pltpu.CompilerParams(
            dimension_semantics=("parallel",),
            # A cap (not a reservation): raises the default scoped limit so the pipeline
            # keeps headroom on v5e/v6e and matches the v7x physical budget.
            vmem_limit_bytes=64 * 1024 * 1024,
        ),
    )(*inputs)


# ---------------------------------------------------------------------------
# Weight folding: 3x3 (and 1x1) conv weights -> banded "row matmul" matrices.
# T[(w_src, ci), (w_out, co)] = w[dh, dw, ci, co] for the (w_src, w_out) pairs that tap
# (dh, dw) connects within one image row; pairs that would read the left/right zero pad
# are simply dropped (they contribute 0).  One matrix per (dh, column-phase) pair.
# A few hundred KB at these widths; could be hoisted to param-prep for static H/W.
# ---------------------------------------------------------------------------

def _fold_conv_weights(w3, s, Wo):
    """w3: (3, 3, Cin, Cout).  Returns (mats (n_mm, Wo*Cin, Wo*Cout) bf16,
    meta tuple of (phase_index, row_offset) per matmul)."""
    _, _, Cin, Cout = w3.shape
    mats, meta = [], []
    for dh in range(3):
        t_row, q0 = dh % s, dh // s
        for t_col in range(s):
            T = jnp.zeros((Wo, Cin, Wo, Cout), jnp.float32)
            for dw in range(3):
                if dw % s != t_col:
                    continue
                # Source column (inside the column-phase buffer) for output column w is
                # w + off; column-phase 0 virtually holds the left zero-pad column.
                off = dw // s - (1 if t_col == 0 else 0)
                lo, hi = max(0, -off), min(Wo, Wo - off)
                if lo >= hi:
                    continue
                wo_idx = jnp.arange(lo, hi)
                T = T.at[wo_idx + off, :, wo_idx, :].add(
                    jnp.broadcast_to(w3[dh, dw][None], (hi - lo, Cin, Cout)))
            mats.append(T.reshape(Wo * Cin, Wo * Cout))
            meta.append((t_row * s + t_col, q0))
    return jnp.stack(mats).astype(jnp.bfloat16), tuple(meta)


def _fold_shortcut_weights(wsc, Wo):
    """wsc: (Cin, Cout) 1x1 conv -> block-diagonal (Wo*Cin, Wo*Cout) bf16."""
    Cin, Cout = wsc.shape
    wi = jnp.arange(Wo)
    T = jnp.zeros((Wo, Cin, Wo, Cout), jnp.float32)
    T = T.at[wi, :, wi, :].set(jnp.broadcast_to(wsc[None], (Wo, Cin, Cout)))
    return T.reshape(Wo * Cin, Wo * Cout).astype(jnp.bfloat16)


# ---------------------------------------------------------------------------
# JAX-side glue
# ---------------------------------------------------------------------------

def _phase_decompose(x_nhwc, s):
    """(N,H,W,C) -> (s*s, N, H//s, (W//s)*C), row-flattened (lane-dense).  Phase
    t = py*s+px holds x rows/cols whose zero-padded (pad=1) coord is == (py,px) mod s."""
    N, H, W, C = x_nhwc.shape
    if s == 1:
        return x_nhwc.reshape(1, N, H, W * C)
    parts = []
    for py in range(s):
        rp = (py - 1) % s
        for px in range(s):
            cp = (px - 1) % s
            parts.append(x_nhwc[:, rp::s, cp::s, :].reshape(N, H // s, (W // s) * C))
    return jnp.stack(parts, axis=0)


def wide_basic_block(x_nchw, params, stride=1):
    """Eval-mode forward of the PyTorch WideBasicBlock: (N,Cin,H,W) -> (N,Cout,Ho,Wo)."""
    s = stride
    N, Cin, H, W = x_nchw.shape
    Cout = params["w1"].shape[-1]
    Ho, Wo = H // s, W // s
    if "wsc" not in params:
        # The PyTorch module uses nn.Identity whenever in_planes == out_planes; the
        # residual add is only shape-valid there for stride 1 (same as the original).
        assert s == 1, "identity shortcut requires stride == 1"

    x = jnp.transpose(x_nchw, (0, 2, 3, 1))                  # NHWC
    phases = _phase_decompose(x, s)                          # (s*s, N, Ho, Wo*Cin)

    scale1 = jnp.tile(params["scale1"], (1, Wo))             # (1, Wo*Cin), lane-dense
    shift1 = jnp.tile(params["shift1"], (1, Wo))
    w1_mm, meta1 = _fold_conv_weights(params["w1"], s, Wo)

    if "wsc" in params:                                      # conv shortcut (in != out)
        wsc_mm = _fold_shortcut_weights(params["wsc"], Wo)
        h, sc = _fused_pre_act_conv(phases, scale1, shift1, w1_mm, meta1, Cin=Cin,
                                    wsc_mm=wsc_mm, stride=s, out_dtype=jnp.bfloat16)
    else:                                                    # identity shortcut: raw x
        h = _fused_pre_act_conv(phases, scale1, shift1, w1_mm, meta1, Cin=Cin,
                                stride=s, out_dtype=jnp.bfloat16)
        sc = x.reshape(N, H, W * Cin)                        # f32, already in HBM

    # TODO(synk): dropout is an eval-mode identity here (no RNG-driven masking in-kernel).
    scale2 = jnp.tile(params["scale2"], (1, Wo))
    shift2 = jnp.tile(params["shift2"], (1, Wo))
    w2_mm, meta2 = _fold_conv_weights(params["w2"], 1, Wo)
    out = _fused_pre_act_conv(h[None], scale2, shift2, w2_mm, meta2, Cin=Cout,
                              res=sc, stride=1, out_dtype=jnp.float32)

    out = out.reshape(N, Ho, Wo, Cout)
    return jnp.transpose(out, (0, 3, 1, 2))                  # back to NCHW


# ---------------------------------------------------------------------------
# Parameters: PyTorch-style init; BN folding hoisted to param-prep time
# ---------------------------------------------------------------------------

def make_block_params(key, in_planes, out_planes, eps=1e-5):
    ks = jax.random.split(key, 5)

    def kaiming(k, cout, cin, kh, kw):
        fan_out = cout * kh * kw
        std = (2.0 / fan_out) ** 0.5
        return std * jax.random.normal(k, (cout, cin, kh, kw), jnp.float32)

    def bn_stats(kk, c):
        kg, kb, km, kv = jax.random.split(kk, 4)
        gamma = jax.random.uniform(kg, (c,), jnp.float32, 0.5, 1.5)
        beta = 0.1 * jax.random.normal(kb, (c,), jnp.float32)
        mean = 0.2 * jax.random.normal(km, (c,), jnp.float32)
        var = jax.random.uniform(kv, (c,), jnp.float32, 0.5, 1.5)
        return gamma, beta, mean, var

    bn1 = bn_stats(ks[0], in_planes)
    bn2 = bn_stats(ks[1], out_planes)
    w1 = kaiming(ks[2], out_planes, in_planes, 3, 3)         # OIHW
    w2 = kaiming(ks[3], out_planes, out_planes, 3, 3)

    def fold(bn):
        g, b, m, v = bn
        scale = g / jnp.sqrt(v + eps)
        shift = b - m * scale
        return scale.reshape(1, -1), shift.reshape(1, -1)

    s1, sh1 = fold(bn1)
    s2, sh2 = fold(bn2)
    kernel_params = {
        "scale1": s1, "shift1": sh1, "scale2": s2, "shift2": sh2,
        "w1": jnp.transpose(w1, (2, 3, 1, 0)),               # (kh, kw, Cin, Cout)
        "w2": jnp.transpose(w2, (2, 3, 1, 0)),
    }
    raw_params = {"bn1": bn1, "bn2": bn2, "conv1": w1, "conv2": w2}
    if in_planes != out_planes:
        wsc = kaiming(ks[4], out_planes, in_planes, 1, 1)
        kernel_params["wsc"] = jnp.transpose(wsc[:, :, 0, 0], (1, 0))   # (Cin, Cout)
        raw_params["wsc"] = wsc
    return kernel_params, raw_params


# ---------------------------------------------------------------------------
# Pure-JAX reference (mirrors the PyTorch module, eval mode) for sanity checking
# ---------------------------------------------------------------------------

def reference_block(x_nchw, raw, stride, eps=1e-5):
    def bn(x, p):
        g, b, m, v = p
        inv = g / jnp.sqrt(v + eps)
        return x * inv[None, :, None, None] + (b - m * inv)[None, :, None, None]

    def conv(x, w, s, pad):
        return jax.lax.conv_general_dilated(
            x, w, window_strides=(s, s), padding=[(pad, pad), (pad, pad)],
            dimension_numbers=("NCHW", "OIHW", "NCHW"))

    out = jax.nn.relu(bn(x_nchw, raw["bn1"]))
    skip = out if "wsc" in raw else x_nchw
    h = conv(out, raw["conv1"], stride, 1)
    h = jax.nn.relu(bn(h, raw["bn2"]))
    h = conv(h, raw["conv2"], 1, 1)
    sc = conv(skip, raw["wsc"], stride, 0) if "wsc" in raw else skip
    return h + sc


# ---------------------------------------------------------------------------

if __name__ == "__main__":
    key = jax.random.PRNGKey(0)
    kx, kp1, kp2 = jax.random.split(key, 3)

    N, Cin, H, W = 2, 16, 16, 16
    x = jax.random.normal(kx, (N, Cin, H, W), dtype=jnp.float32)

    cases = [
        ("identity-shortcut-s1", 16, 16, 1, kp1),    # in == out, stride 1
        ("conv-shortcut-s2", 16, 32, 2, kp2),        # in != out, stride 2 (downsampling)
    ]
    for name, cin, cout, stride, kp in cases:
        kparams, rparams = make_block_params(kp, cin, cout)
        fwd = jax.jit(functools.partial(wide_basic_block, params=kparams, stride=stride))
        y = fwd(x)
        jax.block_until_ready(y)

        ref = reference_block(x, rparams, stride)
        assert y.shape == ref.shape, (name, y.shape, ref.shape)
        assert bool(jnp.all(jnp.isfinite(y))), name
        err = float(jnp.max(jnp.abs(y - ref)))
        # bf16 MXU operands and bf16 inter-kernel intermediates: percent-level error is
        # intentional (inference-mode trade-off), hence the loose tolerance.
        lim = 0.05 * float(jnp.max(jnp.abs(ref))) + 1e-3
        assert err <= lim, (name, err, lim)

    print("KERNEL_OK")
</pallas_src>

<mosaic_0001>
module attributes {stable_mosaic.version = 11 : i64} {
  func.func @kernel(%arg0: i32, %arg1: memref<1x1x16x256xf32, #tpu.memory_space<vmem>>, %arg2: memref<1x256xf32, #tpu.memory_space<vmem>>, %arg3: memref<1x256xf32, #tpu.memory_space<vmem>>, %arg4: memref<3x256x256xbf16, #tpu.memory_space<vmem>>, %arg5: memref<1x16x256xbf16, #tpu.memory_space<vmem>>, %arg6: memref<1x18x256xbf16, #tpu.memory_space<vmem>>) attributes {dimension_semantics = [#tpu.dimension_semantics<parallel>], iteration_bounds = array<i64: 2>, scalar_prefetch = 0 : i64, scratch_operands = 1 : i64, tpu.core_type = #tpu.core_type<tc>, window_params = [{transform_indices = @transform_0, window_bounds = array<i64: 1, 1, 16, 256>}, {pipeline_mode = #tpu.pipeline_mode<synchronous>, transform_indices = @transform_1, window_bounds = array<i64: 1, 256>}, {pipeline_mode = #tpu.pipeline_mode<synchronous>, transform_indices = @transform_2, window_bounds = array<i64: 1, 256>}, {pipeline_mode = #tpu.pipeline_mode<synchronous>, transform_indices = @transform_3, window_bounds = array<i64: 3, 256, 256>}, {transform_indices = @transform_4, window_bounds = array<i64: 1, 16, 256>}]} {
    %c0 = arith.constant 0 : index
    %c0_0 = arith.constant 0 : index
    %0 = vector.load %arg2[%c0, %c0_0] : memref<1x256xf32, #tpu.memory_space<vmem>>, vector<1x256xf32>
    %c0_1 = arith.constant 0 : index
    %c0_2 = arith.constant 0 : index
    %1 = vector.load %arg3[%c0_1, %c0_2] : memref<1x256xf32, #tpu.memory_space<vmem>>, vector<1x256xf32>
    %c0_3 = arith.constant 0 : index
    %c0_4 = arith.constant 0 : index
    %c0_5 = arith.constant 0 : index
    %c0_6 = arith.constant 0 : index
    %2 = vector.load %arg1[%c0_3, %c0_4, %c0_5, %c0_6] : memref<1x1x16x256xf32, #tpu.memory_space<vmem>>, vector<1x1x16x256xf32>
    %3 = vector.shape_cast %2 : vector<1x1x16x256xf32> to vector<16x256xf32>
    %4 = vector.broadcast %0 : vector<1x256xf32> to vector<16x256xf32>
    %5 = arith.mulf %3, %4 : vector<16x256xf32>
    %6 = vector.broadcast %1 : vector<1x256xf32> to vector<16x256xf32>
    %7 = arith.addf %5, %6 : vector<16x256xf32>
    %cst = arith.constant 0.000000e+00 : f32
    %8 = vector.broadcast %cst : f32 to vector<16x256xf32>
    %9 = arith.maximumf %7, %8 : vector<16x256xf32>
    %10 = arith.truncf %9 : vector<16x256xf32> to vector<16x256xbf16>
    %c0_7 = arith.constant 0 : index
    %c1 = arith.constant 1 : index
    %c0_8 = arith.constant 0 : index
    %11 = vector.load %arg6[%c0_7, %c1, %c0_8] : memref<1x18x256xbf16, #tpu.memory_space<vmem>>, vector<1x16x256xbf16>
    %12 = vector.shape_cast %11 : vector<1x16x256xbf16> to vector<16x256xbf16>
    %13 = vector.shape_cast %10 : vector<16x256xbf16> to vector<1x16x256xbf16>
    tpu.vector_store %arg6[%c0_7, %c1, %c0_8], %13 {strides = array<i32>} : memref<1x18x256xbf16, #tpu.memory_space<vmem>>, vector<1x16x256xbf16>,
    %cst_9 = arith.constant 0.000000e+00 : bf16
    %14 = vector.broadcast %cst_9 : bf16 to vector<1x256xbf16>
    %c0_10 = arith.constant 0 : index
    %c0_11 = arith.constant 0 : index
    %c0_12 = arith.constant 0 : index
    %15 = vector.load %arg6[%c0_10, %c0_11, %c0_12] : memref<1x18x256xbf16, #tpu.memory_space<vmem>>, vector<1x1x256xbf16>
    %16 = vector.shape_cast %15 : vector<1x1x256xbf16> to vector<1x256xbf16>
    %17 = vector.shape_cast %14 : vector<1x256xbf16> to vector<1x1x256xbf16>
    tpu.vector_store %arg6[%c0_10, %c0_11, %c0_12], %17 {strides = array<i32>} : memref<1x18x256xbf16, #tpu.memory_space<vmem>>, vector<1x1x256xbf16>,
    %cst_13 = arith.constant 0.000000e+00 : bf16
    %18 = vector.broadcast %cst_13 : bf16 to vector<1x256xbf16>
    %c0_14 = arith.constant 0 : index
    %c17 = arith.constant 17 : index
    %c0_15 = arith.constant 0 : index
    %19 = vector.load %arg6[%c0_14, %c17, %c0_15] : memref<1x18x256xbf16, #tpu.memory_space<vmem>>, vector<1x1x256xbf16>
    %20 = vector.shape_cast %19 : vector<1x1x256xbf16> to vector<1x256xbf16>
    %21 = vector.shape_cast %18 : vector<1x256xbf16> to vector<1x1x256xbf16>
    tpu.vector_store %arg6[%c0_14, %c17, %c0_15], %21 {strides = array<i32>} : memref<1x18x256xbf16, #tpu.memory_space<vmem>>, vector<1x1x256xbf16>,
    %cst_16 = arith.constant 0.000000e+00 : f32
    %22 = vector.broadcast %cst_16 : f32 to vector<16x256xf32>
    %c0_17 = arith.constant 0 : index
    %c0_18 = arith.constant 0 : index
    %c0_19 = arith.constant 0 : index
    %23 = vector.load %arg6[%c0_17, %c0_18, %c0_19] : memref<1x18x256xbf16, #tpu.memory_space<vmem>>, vector<1x16x256xbf16>
    %24 = vector.shape_cast %23 : vector<1x16x256xbf16> to vector<16x256xbf16>
    %c0_20 = arith.constant 0 : index
    %c0_21 = arith.constant 0 : index
    %c0_22 = arith.constant 0 : index
    %25 = vector.load %arg4[%c0_20, %c0_21, %c0_22] : memref<3x256x256xbf16, #tpu.memory_space<vmem>>, vector<1x256x256xbf16>
    %26 = vector.shape_cast %25 : vector<1x256x256xbf16> to vector<256x256xbf16>
    %cst_23 = arith.constant dense<0.000000e+00> : vector<16x256xf32>
    %27 = tpu.matmul %24, %26, %cst_23 {dimension_numbers = #tpu.dot_dimension_numbers<[1], [0], [0], [1], [0, 0, 1, 1], [], []>} : vector<16x256xbf16>, vector<256x256xbf16>, vector<16x256xf32> -> vector<16x256xf32>
    %28 = arith.addf %22, %27 : vector<16x256xf32>
    %c0_24 = arith.constant 0 : index
    %c1_25 = arith.constant 1 : index
    %c0_26 = arith.constant 0 : index
    %29 = vector.load %arg6[%c0_24, %c1_25, %c0_26] : memref<1x18x256xbf16, #tpu.memory_space<vmem>>, vector<1x16x256xbf16>
    %30 = vector.shape_cast %29 : vector<1x16x256xbf16> to vector<16x256xbf16>
    %c1_27 = arith.constant 1 : index
    %c0_28 = arith.constant 0 : index
    %c0_29 = arith.constant 0 : index
    %31 = vector.load %arg4[%c1_27, %c0_28, %c0_29] : memref<3x256x256xbf16, #tpu.memory_space<vmem>>, vector<1x256x256xbf16>
    %32 = vector.shape_cast %31 : vector<1x256x256xbf16> to vector<256x256xbf16>
    %cst_30 = arith.constant dense<0.000000e+00> : vector<16x256xf32>
    %33 = tpu.matmul %30, %32, %cst_30 {dimension_numbers = #tpu.dot_dimension_numbers<[1], [0], [0], [1], [0, 0, 1, 1], [], []>} : vector<16x256xbf16>, vector<256x256xbf16>, vector<16x256xf32> -> vector<16x256xf32>
    %34 = arith.addf %28, %33 : vector<16x256xf32>
    %c0_31 = arith.constant 0 : index
    %c2 = arith.constant 2 : index
    %c0_32 = arith.constant 0 : index
    %35 = vector.load %arg6[%c0_31, %c2, %c0_32] : memref<1x18x256xbf16, #tpu.memory_space<vmem>>, vector<1x16x256xbf16>
    %36 = vector.shape_cast %35 : vector<1x16x256xbf16> to vector<16x256xbf16>
    %c2_33 = arith.constant 2 : index
    %c0_34 = arith.constant 0 : index
    %c0_35 = arith.constant 0 : index
    %37 = vector.load %arg4[%c2_33, %c0_34, %c0_35] : memref<3x256x256xbf16, #tpu.memory_space<vmem>>, vector<1x256x256xbf16>
    %38 = vector.shape_cast %37 : vector<1x256x256xbf16> to vector<256x256xbf16>
    %cst_36 = arith.constant dense<0.000000e+00> : vector<16x256xf32>
    %39 = tpu.matmul %36, %38, %cst_36 {dimension_numbers = #tpu.dot_dimension_numbers<[1], [0], [0], [1], [0, 0, 1, 1], [], []>} : vector<16x256xbf16>, vector<256x256xbf16>, vector<16x256xf32> -> vector<16x256xf32>
    %40 = arith.addf %34, %39 : vector<16x256xf32>
    %41 = vector.shape_cast %40 : vector<16x256xf32> to vector<1x16x256xf32>
    %42 = arith.truncf %41 : vector<1x16x256xf32> to vector<1x16x256xbf16>
    %c0_37 = arith.constant 0 : index
    %c0_38 = arith.constant 0 : index
    %c0_39 = arith.constant 0 : index
    %43 = vector.load %arg5[%c0_37, %c0_38, %c0_39] : memref<1x16x256xbf16, #tpu.memory_space<vmem>>, vector<1x16x256xbf16>
    tpu.vector_store %arg5[%c0_37, %c0_38, %c0_39], %42 {strides = array<i32>} : memref<1x16x256xbf16, #tpu.memory_space<vmem>>, vector<1x16x256xbf16>,
    return
  }
  func.func @transform_0(%arg0: i32) -> (i32, i32, i32, i32) {
    %c0_i32 = arith.constant 0 : i32
    %c0_i32_0 = arith.constant 0 : i32
    %c0_i32_1 = arith.constant 0 : i32
    %c0_i32_2 = arith.constant 0 : i32
    return %c0_i32, %arg0, %c0_i32_0, %c0_i32_1 : i32, i32, i32, i32
  }
  func.func @transform_1(%arg0: i32) -> (i32, i32) {
    %c0_i32 = arith.constant 0 : i32
    %c0_i32_0 = arith.constant 0 : i32
    %c0_i32_1 = arith.constant 0 : i32
    return %c0_i32, %c0_i32_0 : i32, i32
  }
  func.func @transform_2(%arg0: i32) -> (i32, i32) {
    %c0_i32 = arith.constant 0 : i32
    %c0_i32_0 = arith.constant 0 : i32
    %c0_i32_1 = arith.constant 0 : i32
    return %c0_i32, %c0_i32_0 : i32, i32
  }
  func.func @transform_3(%arg0: i32) -> (i32, i32, i32) {
    %c0_i32 = arith.constant 0 : i32
    %c0_i32_0 = arith.constant 0 : i32
    %c0_i32_1 = arith.constant 0 : i32
    %c0_i32_2 = arith.constant 0 : i32
    return %c0_i32, %c0_i32_0, %c0_i32_1 : i32, i32, i32
  }
  func.func @transform_4(%arg0: i32) -> (i32, i32, i32) {
    %c0_i32 = arith.constant 0 : i32
    %c0_i32_0 = arith.constant 0 : i32
    %c0_i32_1 = arith.constant 0 : i32
    return %arg0, %c0_i32, %c0_i32_0 : i32, i32, i32
  }
}

module attributes {stable_mosaic.version = 11 : i64} {
  func.func @kernel(%arg0: i32, %arg1: memref<1x1x16x256xbf16, #tpu.memory_space<vmem>>, %arg2: memref<1x256xf32, #tpu.memory_space<vmem>>, %arg3: memref<1x256xf32, #tpu.memory_space<vmem>>, %arg4: memref<3x256x256xbf16, #tpu.memory_space<vmem>>, %arg5: memref<1x16x256xf32, #tpu.memory_space<vmem>>, %arg6: memref<1x16x256xf32, #tpu.memory_space<vmem>>, %arg7: memref<1x18x256xbf16, #tpu.memory_space<vmem>>) attributes {dimension_semantics = [#tpu.dimension_semantics<parallel>], iteration_bounds = array<i64: 2>, scalar_prefetch = 0 : i64, scratch_operands = 1 : i64, tpu.core_type = #tpu.core_type<tc>, window_params = [{transform_indices = @transform_0, window_bounds = array<i64: 1, 1, 16, 256>}, {pipeline_mode = #tpu.pipeline_mode<synchronous>, transform_indices = @transform_1, window_bounds = array<i64: 1, 256>}, {pipeline_mode = #tpu.pipeline_mode<synchronous>, transform_indices = @transform_2, window_bounds = array<i64: 1, 256>}, {pipeline_mode = #tpu.pipeline_mode<synchronous>, transform_indices = @transform_3, window_bounds = array<i64: 3, 256, 256>}, {transform_indices = @transform_4, window_bounds = array<i64: 1, 16, 256>}, {transform_indices = @transform_5, window_bounds = array<i64: 1, 16, 256>}]} {
    %c0 = arith.constant 0 : index
    %c0_0 = arith.constant 0 : index
    %0 = vector.load %arg2[%c0, %c0_0] : memref<1x256xf32, #tpu.memory_space<vmem>>, vector<1x256xf32>
    %c0_1 = arith.constant 0 : index
    %c0_2 = arith.constant 0 : index
    %1 = vector.load %arg3[%c0_1, %c0_2] : memref<1x256xf32, #tpu.memory_space<vmem>>, vector<1x256xf32>
    %c0_3 = arith.constant 0 : index
    %c0_4 = arith.constant 0 : index
    %c0_5 = arith.constant 0 : index
    %c0_6 = arith.constant 0 : index
    %2 = vector.load %arg1[%c0_3, %c0_4, %c0_5, %c0_6] : memref<1x1x16x256xbf16, #tpu.memory_space<vmem>>, vector<1x1x16x256xbf16>
    %3 = vector.shape_cast %2 : vector<1x1x16x256xbf16> to vector<16x256xbf16>
    %4 = arith.extf %3 : vector<16x256xbf16> to vector<16x256xf32>
    %5 = vector.broadcast %0 : vector<1x256xf32> to vector<16x256xf32>
    %6 = arith.mulf %4, %5 : vector<16x256xf32>
    %7 = vector.broadcast %1 : vector<1x256xf32> to vector<16x256xf32>
    %8 = arith.addf %6, %7 : vector<16x256xf32>
    %cst = arith.constant 0.000000e+00 : f32
    %9 = vector.broadcast %cst : f32 to vector<16x256xf32>
    %10 = arith.maximumf %8, %9 : vector<16x256xf32>
    %11 = arith.truncf %10 : vector<16x256xf32> to vector<16x256xbf16>
    %c0_7 = arith.constant 0 : index
    %c1 = arith.constant 1 : index
    %c0_8 = arith.constant 0 : index
    %12 = vector.load %arg7[%c0_7, %c1, %c0_8] : memref<1x18x256xbf16, #tpu.memory_space<vmem>>, vector<1x16x256xbf16>
    %13 = vector.shape_cast %12 : vector<1x16x256xbf16> to vector<16x256xbf16>
    %14 = vector.shape_cast %11 : vector<16x256xbf16> to vector<1x16x256xbf16>
    tpu.vector_store %arg7[%c0_7, %c1, %c0_8], %14 {strides = array<i32>} : memref<1x18x256xbf16, #tpu.memory_space<vmem>>, vector<1x16x256xbf16>,
    %cst_9 = arith.constant 0.000000e+00 : bf16
    %15 = vector.broadcast %cst_9 : bf16 to vector<1x256xbf16>
    %c0_10 = arith.constant 0 : index
    %c0_11 = arith.constant 0 : index
    %c0_12 = arith.constant 0 : index
    %16 = vector.load %arg7[%c0_10, %c0_11, %c0_12] : memref<1x18x256xbf16, #tpu.memory_space<vmem>>, vector<1x1x256xbf16>
    %17 = vector.shape_cast %16 : vector<1x1x256xbf16> to vector<1x256xbf16>
    %18 = vector.shape_cast %15 : vector<1x256xbf16> to vector<1x1x256xbf16>
    tpu.vector_store %arg7[%c0_10, %c0_11, %c0_12], %18 {strides = array<i32>} : memref<1x18x256xbf16, #tpu.memory_space<vmem>>, vector<1x1x256xbf16>,
    %cst_13 = arith.constant 0.000000e+00 : bf16
    %19 = vector.broadcast %cst_13 : bf16 to vector<1x256xbf16>
    %c0_14 = arith.constant 0 : index
    %c17 = arith.constant 17 : index
    %c0_15 = arith.constant 0 : index
    %20 = vector.load %arg7[%c0_14, %c17, %c0_15] : memref<1x18x256xbf16, #tpu.memory_space<vmem>>, vector<1x1x256xbf16>
    %21 = vector.shape_cast %20 : vector<1x1x256xbf16> to vector<1x256xbf16>
    %22 = vector.shape_cast %19 : vector<1x256xbf16> to vector<1x1x256xbf16>
    tpu.vector_store %arg7[%c0_14, %c17, %c0_15], %22 {strides = array<i32>} : memref<1x18x256xbf16, #tpu.memory_space<vmem>>, vector<1x1x256xbf16>,
    %cst_16 = arith.constant 0.000000e+00 : f32
    %23 = vector.broadcast %cst_16 : f32 to vector<16x256xf32>
    %c0_17 = arith.constant 0 : index
    %c0_18 = arith.constant 0 : index
    %c0_19 = arith.constant 0 : index
    %24 = vector.load %arg7[%c0_17, %c0_18, %c0_19] : memref<1x18x256xbf16, #tpu.memory_space<vmem>>, vector<1x16x256xbf16>
    %25 = vector.shape_cast %24 : vector<1x16x256xbf16> to vector<16x256xbf16>
    %c0_20 = arith.constant 0 : index
    %c0_21 = arith.constant 0 : index
    %c0_22 = arith.constant 0 : index
    %26 = vector.load %arg4[%c0_20, %c0_21, %c0_22] : memref<3x256x256xbf16, #tpu.memory_space<vmem>>, vector<1x256x256xbf16>
    %27 = vector.shape_cast %26 : vector<1x256x256xbf16> to vector<256x256xbf16>
    %cst_23 = arith.constant dense<0.000000e+00> : vector<16x256xf32>
    %28 = tpu.matmul %25, %27, %cst_23 {dimension_numbers = #tpu.dot_dimension_numbers<[1], [0], [0], [1], [0, 0, 1, 1], [], []>} : vector<16x256xbf16>, vector<256x256xbf16>, vector<16x256xf32> -> vector<16x256xf32>
    %29 = arith.addf %23, %28 : vector<16x256xf32>
    %c0_24 = arith.constant 0 : index
    %c1_25 = arith.constant 1 : index
    %c0_26 = arith.constant 0 : index
    %30 = vector.load %arg7[%c0_24, %c1_25, %c0_26] : memref<1x18x256xbf16, #tpu.memory_space<vmem>>, vector<1x16x256xbf16>
    %31 = vector.shape_cast %30 : vector<1x16x256xbf16> to vector<16x256xbf16>
    %c1_27 = arith.constant 1 : index
    %c0_28 = arith.constant 0 : index
    %c0_29 = arith.constant 0 : index
    %32 = vector.load %arg4[%c1_27, %c0_28, %c0_29] : memref<3x256x256xbf16, #tpu.memory_space<vmem>>, vector<1x256x256xbf16>
    %33 = vector.shape_cast %32 : vector<1x256x256xbf16> to vector<256x256xbf16>
    %cst_30 = arith.constant dense<0.000000e+00> : vector<16x256xf32>
    %34 = tpu.matmul %31, %33, %cst_30 {dimension_numbers = #tpu.dot_dimension_numbers<[1], [0], [0], [1], [0, 0, 1, 1], [], []>} : vector<16x256xbf16>, vector<256x256xbf16>, vector<16x256xf32> -> vector<16x256xf32>
    %35 = arith.addf %29, %34 : vector<16x256xf32>
    %c0_31 = arith.constant 0 : index
    %c2 = arith.constant 2 : index
    %c0_32 = arith.constant 0 : index
    %36 = vector.load %arg7[%c0_31, %c2, %c0_32] : memref<1x18x256xbf16, #tpu.memory_space<vmem>>, vector<1x16x256xbf16>
    %37 = vector.shape_cast %36 : vector<1x16x256xbf16> to vector<16x256xbf16>
    %c2_33 = arith.constant 2 : index
    %c0_34 = arith.constant 0 : index
    %c0_35 = arith.constant 0 : index
    %38 = vector.load %arg4[%c2_33, %c0_34, %c0_35] : memref<3x256x256xbf16, #tpu.memory_space<vmem>>, vector<1x256x256xbf16>
    %39 = vector.shape_cast %38 : vector<1x256x256xbf16> to vector<256x256xbf16>
    %cst_36 = arith.constant dense<0.000000e+00> : vector<16x256xf32>
    %40 = tpu.matmul %37, %39, %cst_36 {dimension_numbers = #tpu.dot_dimension_numbers<[1], [0], [0], [1], [0, 0, 1, 1], [], []>} : vector<16x256xbf16>, vector<256x256xbf16>, vector<16x256xf32> -> vector<16x256xf32>
    %41 = arith.addf %35, %40 : vector<16x256xf32>
    %c0_37 = arith.constant 0 : index
    %c0_38 = arith.constant 0 : index
    %c0_39 = arith.constant 0 : index
    %42 = vector.load %arg5[%c0_37, %c0_38, %c0_39] : memref<1x16x256xf32, #tpu.memory_space<vmem>>, vector<1x16x256xf32>
    %43 = vector.shape_cast %42 : vector<1x16x256xf32> to vector<16x256xf32>
    %44 = arith.addf %41, %43 : vector<16x256xf32>
    %45 = vector.shape_cast %44 : vector<16x256xf32> to vector<1x16x256xf32>
    %c0_40 = arith.constant 0 : index
    %c0_41 = arith.constant 0 : index
    %c0_42 = arith.constant 0 : index
    %46 = vector.load %arg6[%c0_40, %c0_41, %c0_42] : memref<1x16x256xf32, #tpu.memory_space<vmem>>, vector<1x16x256xf32>
    tpu.vector_store %arg6[%c0_40, %c0_41, %c0_42], %45 {strides = array<i32>} : memref<1x16x256xf32, #tpu.memory_space<vmem>>, vector<1x16x256xf32>,
    return
  }
  func.func @transform_0(%arg0: i32) -> (i32, i32, i32, i32) {
    %c0_i32 = arith.constant 0 : i32
    %c0_i32_0 = arith.constant 0 : i32
    %c0_i32_1 = arith.constant 0 : i32
    %c0_i32_2 = arith.constant 0 : i32
    return %c0_i32, %arg0, %c0_i32_0, %c0_i32_1 : i32, i32, i32, i32
  }
  func.func @transform_1(%arg0: i32) -> (i32, i32) {
    %c0_i32 = arith.constant 0 : i32
    %c0_i32_0 = arith.constant 0 : i32
    %c0_i32_1 = arith.constant 0 : i32
    return %c0_i32, %c0_i32_0 : i32, i32
  }
  func.func @transform_2(%arg0: i32) -> (i32, i32) {
    %c0_i32 = arith.constant 0 : i32
    %c0_i32_0 = arith.constant 0 : i32
    %c0_i32_1 = arith.constant 0 : i32
    return %c0_i32, %c0_i32_0 : i32, i32
  }
  func.func @transform_3(%arg0: i32) -> (i32, i32, i32) {
    %c0_i32 = arith.constant 0 : i32
    %c0_i32_0 = arith.constant 0 : i32
    %c0_i32_1 = arith.constant 0 : i32
    %c0_i32_2 = arith.constant 0 : i32
    return %c0_i32, %c0_i32_0, %c0_i32_1 : i32, i32, i32
  }
  func.func @transform_4(%arg0: i32) -> (i32, i32, i32) {
    %c0_i32 = arith.constant 0 : i32
    %c0_i32_0 = arith.constant 0 : i32
    %c0_i32_1 = arith.constant 0 : i32
    return %arg0, %c0_i32, %c0_i32_0 : i32, i32, i32
  }
  func.func @transform_5(%arg0: i32) -> (i32, i32, i32) {
    %c0_i32 = arith.constant 0 : i32
    %c0_i32_0 = arith.constant 0 : i32
    %c0_i32_1 = arith.constant 0 : i32
    return %arg0, %c0_i32, %c0_i32_0 : i32, i32, i32
  }
}

</mosaic_0001>

<llo_original>
// kernel: wide_basic_block.2
$region0: #{wide_basic_block.2}
  #allocation0 [shape = 'u32[]', space=smem, size = 0x4, offset = 0x4, fixed_abs, tag = 'smem constant byte address 0x4 - core index']
  #allocation1 [shape = 'u32[144,128]{1,0:T(1,128)}', space=vmem, size = 0x12000, scoped, tag = 'internal scratch']
  #allocation2 [shape = 'bf16[1,18,256]{2,1,0:T(8,128)(2,1)}', space=vmem, size = 0x3000, scoped, tag = 'scratch operand']
  %s0 = inlined_call_operand.vmem [shape: f32[1,2,16,256], index: 0, kind: input, shape index: {}]
  %s1 = inlined_call_operand.vmem [shape: f32[1,256], index: 1, kind: input, shape index: {}]
  %s2 = inlined_call_operand.vmem [shape: f32[1,256], index: 2, kind: input, shape index: {}]
  %s3 = inlined_call_operand.vmem [shape: bf16[3,256,256], index: 3, kind: input, shape index: {}]
  %s4 = inlined_call_operand.vmem [shape: bf16[2,16,256], index: 4, kind: output, shape index: {}]
  %s5 = sld [smem:[#allocation0]]
  $region49: #{wide_basic_block.2} parent=0
    _
  %s7 = ssub.s32 1, %s5
  %s8 = scalar_select 0, %s7, %s5
  loop: start=0, step=1, limit=4
  $region2: #{wide_basic_block.2} parent=0 // loop_pre_header
    _
  $region3: #{wide_basic_block.2} parent=0 // loop_header
    %s10 = sphi 0, %s14
    %p11 = scmp.ge.s32.totalorder %s10, 4
    %s20 = sphi 0, %s22
    %s23 = sphi 0, %s20
    %s24 = sphi 0, %s23
    %s40 = sphi 0, %s24
    %s44 = sphi 0, %s44
    %s46 = sphi 0, %s44
    %s47 = sphi 0, %s46
    %s61 = sphi 0, %s47
    %s65 = sphi 0, %s65
    %s67 = sphi 0, %s65
    %s68 = sphi 0, %s67
    %s82 = sphi 0, %s68
    %s86 = sphi 0, %s86
    %s88 = sphi 0, %s86
    %s89 = sphi 0, %s88
    %s103 = sphi 0, %s89
    %s109 = sphi 0, %s111
    %s112 = sphi 0, %s109
    %s113 = sphi 0, %s112
    %s129 = sphi 0, %s113
  $region4: #{wide_basic_block.2} parent=0 // loop_header_branch
    %13 = sbr.rel (%p11) target = $region8
  $region5: #{wide_basic_block.2} parent=0 // loop_body
    %s15 = ssub.s32 %s10, 1
    %s16 = ssub.s32 %s10, 2
    %s17 = sadd.s32 %s10, 1
    %s18 = ssub.s32 %s10, %s17
    %p19 = scmp.eq.s32.totalorder %s18, 0
    %s21 = sadd.s32 %s20, 1
    %s22 = scalar_select %p19, %s20, %s21
    %p25 = pneg %p19
    %p26 = scmp.eq.s32.totalorder %s10, 1
    %p27 = por %p25, %p26
    %p28 = scmp.ne.s32.totalorder %s20, %s23
    %p29 = scmp.eq.s32.totalorder %s10, 0
    %p30 = por %p28, %p29
    %p31 = scmp.ne.s32.totalorder %s20, %s23
    %p32 = scmp.eq.s32.totalorder %s15, 1
    %p33 = por %p31, %p32
    %p34 = scmp.ne.s32.totalorder %s23, %s24
    %p35 = scmp.eq.s32.totalorder %s15, 0
    %p36 = por %p34, %p35
    %p37 = scmp.ne.s32.totalorder %s23, %s24
    %p38 = scmp.eq.s32.totalorder %s16, 1
    %p39 = por %p37, %p38
    %p41 = scmp.ne.s32.totalorder %s24, %s40
    %p42 = scmp.eq.s32.totalorder %s16, 0
    %p43 = por %p41, %p42
    %s45 = sadd.s32 %s44, 1
    %p48 = scmp.eq.s32.totalorder %s10, 1
    %p49 = scmp.ne.s32.totalorder %s44, %s46
    %p50 = scmp.eq.s32.totalorder %s10, 0
    %p51 = por %p49, %p50
    %p52 = scmp.ne.s32.totalorder %s44, %s46
    %p53 = scmp.eq.s32.totalorder %s15, 1
    %p54 = por %p52, %p53
    %p55 = scmp.ne.s32.totalorder %s46, %s47
    %p56 = scmp.eq.s32.totalorder %s15, 0
    %p57 = por %p55, %p56
    %p58 = scmp.ne.s32.totalorder %s46, %s47
    %p59 = scmp.eq.s32.totalorder %s16, 1
    %p60 = por %p58, %p59
    %p62 = scmp.ne.s32.totalorder %s47, %s61
    %p63 = scmp.eq.s32.totalorder %s16, 0
    %p64 = por %p62, %p63
    %s66 = sadd.s32 %s65, 1
    %p69 = scmp.eq.s32.totalorder %s10, 1
    %p70 = scmp.ne.s32.totalorder %s65, %s67
    %p71 = scmp.eq.s32.totalorder %s10, 0
    %p72 = por %p70, %p71
    %p73 = scmp.ne.s32.totalorder %s65, %s67
    %p74 = scmp.eq.s32.totalorder %s15, 1
    %p75 = por %p73, %p74
    %p76 = scmp.ne.s32.totalorder %s67, %s68
    %p77 = scmp.eq.s32.totalorder %s15, 0
    %p78 = por %p76, %p77
    %p79 = scmp.ne.s32.totalorder %s67, %s68
    %p80 = scmp.eq.s32.totalorder %s16, 1
    %p81 = por %p79, %p80
    %p83 = scmp.ne.s32.totalorder %s68, %s82
    %p84 = scmp.eq.s32.totalorder %s16, 0
    %p85 = por %p83, %p84
    %s87 = sadd.s32 %s86, 1
    %p90 = scmp.eq.s32.totalorder %s10, 1
    %p91 = scmp.ne.s32.totalorder %s86, %s88
    %p92 = scmp.eq.s32.totalorder %s10, 0
    %p93 = por %p91, %p92
    %p94 = scmp.ne.s32.totalorder %s86, %s88
    %p95 = scmp.eq.s32.totalorder %s15, 1
    %p96 = por %p94, %p95
    %p97 = scmp.ne.s32.totalorder %s88, %s89
    %p98 = scmp.eq.s32.totalorder %s15, 0
    %p99 = por %p97, %p98
    %p100 = scmp.ne.s32.totalorder %s88, %s89
    %p101 = scmp.eq.s32.totalorder %s16, 1
    %p102 = por %p100, %p101
    %p104 = scmp.ne.s32.totalorder %s89, %s103
    %p105 = scmp.eq.s32.totalorder %s16, 0
    %p106 = por %p104, %p105
    %s107 = ssub.s32 %s10, %s17
    %p108 = scmp.eq.s32.totalorder %s107, 0
    %s110 = sadd.s32 %s109, 1
    %s111 = scalar_select %p108, %s109, %s110
    %p114 = pneg %p108
    %p115 = scmp.eq.s32.totalorder %s10, 1
    %p116 = por %p114, %p115
    %p117 = scmp.ne.s32.totalorder %s109, %s112
    %p118 = scmp.eq.s32.totalorder %s10, 0
    %p119 = por %p117, %p118
    %p120 = scmp.ne.s32.totalorder %s109, %s112
    %p121 = scmp.eq.s32.totalorder %s15, 1
    %p122 = por %p120, %p121
    %p123 = scmp.ne.s32.totalorder %s112, %s113
    %p124 = scmp.eq.s32.totalorder %s15, 0
    %p125 = por %p123, %p124
    %p126 = scmp.ne.s32.totalorder %s112, %s113
    %p127 = scmp.eq.s32.totalorder %s16, 1
    %p128 = por %p126, %p127
    %p130 = scmp.ne.s32.totalorder %s113, %s129
    %p131 = scmp.eq.s32.totalorder %s16, 0
    %p132 = por %p130, %p131
    %p133 = scmp.le.s32.totalorder 1, %s10
    %p134 = scmp.lt.s32.totalorder %s10, 3
    %p135 = pnand %p133, %p134
    %p136 = pneg %p135
    // Predicated region
    $region9: #{wide_basic_block.2} parent=5 // pred_check
      _
    $region10: #{wide_basic_block.2} parent=5 // pred_check_branch
      %138 = sbr.rel (%p135) target = $region12
    $region11: #{wide_basic_block.2} parent=5 // pred_region
      %s139 = ssub.s32 %s10, 1
      // Predicated region
      $region13: #{wide_basic_block.2} parent=11 // pred_check
        %p140 = pneg %p57
      $region14: #{wide_basic_block.2} parent=11 // pred_check_branch
        %142 = sbr.rel (%p140) target = $region16
      $region15: #{wide_basic_block.2} parent=11 // pred_region
        _
      $region16: #{wide_basic_block.2} parent=11 // pred_fallthru
        _
      // Predicated region
      $region17: #{wide_basic_block.2} parent=11 // pred_check
        %p143 = pneg %p78
      $region18: #{wide_basic_block.2} parent=11 // pred_check_branch
        %145 = sbr.rel (%p143) target = $region20
      $region19: #{wide_basic_block.2} parent=11 // pred_region
        _
      $region20: #{wide_basic_block.2} parent=11 // pred_fallthru
        _
      // Predicated region
      $region21: #{wide_basic_block.2} parent=11 // pred_check
        %p146 = pneg %p99
      $region22: #{wide_basic_block.2} parent=11 // pred_check_branch
        %148 = sbr.rel (%p146) target = $region24
      $region23: #{wide_basic_block.2} parent=11 // pred_region
        _
      $region24: #{wide_basic_block.2} parent=11 // pred_fallthru
        _
    $region12: #{wide_basic_block.2} parent=5 // pred_fallthru
      _
    %p149 = scmp.lt.s32.totalorder %s10, 2
    // Predicated region
    $region25: #{wide_basic_block.2} parent=5 // pred_check
      %p150 = pneg %p149
    $region26: #{wide_basic_block.2} parent=5 // pred_check_branch
      %152 = sbr.rel (%p150) target = $region28
    $region27: #{wide_basic_block.2} parent=5 // pred_region
      // Predicated region
      $region29: #{wide_basic_block.2} parent=27 // pred_check
        %p153 = pneg %p30
      $region30: #{wide_basic_block.2} parent=27 // pred_check_branch
        %155 = sbr.rel (%p153) target = $region32
      $region31: #{wide_basic_block.2} parent=27 // pred_region
        %p156 = scmp.lt.s32.totalorder %s10, 1
        %s157 = scalar_select %p156, %s10, 1
        %s158 = smul.addr %s157, 4
        %s159 = smul.addr %s158, 8
        %s160 = scalar_lea.vmem %s0, %s159
      $region32: #{wide_basic_block.2} parent=27 // pred_fallthru
        _
    $region28: #{wide_basic_block.2} parent=5 // pred_fallthru
      _
    %p161 = scmp.le.s32.totalorder 1, %s10
    %p162 = scmp.lt.s32.totalorder %s10, 3
    %p163 = pnand %p161, %p162
    %p164 = pneg %p163
    // Predicated region
    $region33: #{wide_basic_block.2} parent=5 // pred_check
      _
    $region34: #{wide_basic_block.2} parent=5 // pred_check_branch
      %166 = sbr.rel (%p163) target = $region36
    $region35: #{wide_basic_block.2} parent=5 // pred_region
      %s167 = ssub.s32 %s10, 1
      %p168 = scmp.lt.s32.totalorder %s15, 1
      %s169 = scalar_select %p168, %s15, 1
      %s170 = smul.addr %s169, 4
      %s171 = smul.addr %s170, 8
      %s172 = scalar_lea.vmem %s0, %s171
      %p173 = pneg %p36
      %p174 = pneg %p33
      %p175 = pneg %p57
      %p176 = pneg %p54
      %p177 = pneg %p78
      %p178 = pneg %p75
      %p179 = pneg %p99
      %p180 = pneg %p96
      %p181 = pneg %p125
      %p182 = pneg %p122
      %p183 = scmp.lt.s32.totalorder %s15, 1
      %s184 = scalar_select %p183, %s15, 1
      %s185 = smul.addr %s184, 4
      %s186 = smul.addr %s185, 4
      %s187 = scalar_lea.vmem %s4, %s186
      %p188 = scmp.lt.s32.totalorder %s15, 1
      %s189 = scalar_select %p188, %s15, 1
      %s190 = smul.addr %s189, 4
      %s191 = smul.addr %s190, 8
      %s192 = scalar_lea.vmem %s0, %s191
      %p193 = scmp.lt.s32.totalorder %s15, 1
      %s194 = scalar_select %p193, %s15, 1
      %s195 = smul.addr %s194, 4
      %s196 = smul.addr %s195, 4
      %s197 = scalar_lea.vmem %s4, %s196
      %v199 = vld [vmem:[%s1] sm:$0x3]
      %v200 = vld [vmem:[%s2] sm:$0x3]
      %v201 = vld [vmem:[%s192] sm:$0xff]
      %v202 = vld [vmem:[%s192 + $0x8] sm:$0xff]
      %v203 = vld [vmem:[%s192 + $0x10] sm:$0xff]
      %v204 = vld [vmem:[%s192 + $0x18] sm:$0xff]
      %v206 = vlaneseq
      %v207 = vshrl.u32 %v206, 7
      %v208 = vsub.s32 0, %v207
      %v209 = vrot.slane %v199, %v208
      %v210 = vlaneseq
      %v211 = vshrl.u32 %v210, 7
      %v212 = vsub.s32 1, %v211
      %v213 = vrot.slane %v199, %v212
      %v216 = vmul.f32 %v201, %v209
      %v217 = vmul.f32 %v202, %v213
      %v218 = vmul.f32 %v203, %v209
      %v219 = vmul.f32 %v204, %v213
      %v221 = vlaneseq
      %v222 = vshrl.u32 %v221, 7
      %v223 = vsub.s32 0, %v222
      %v224 = vrot.slane %v200, %v223
      %v225 = vlaneseq
      %v226 = vshrl.u32 %v225, 7
      %v227 = vsub.s32 1, %v226
      %v228 = vrot.slane %v200, %v227
      %v231 = vadd.f32 %v216, %v224
      %v232 = vadd.f32 %v217, %v228
      %v233 = vadd.f32 %v218, %v224
      %v234 = vadd.f32 %v219, %v228
      %v235 = vmax.f32 %v231, 0.0
      %v236 = vmax.f32 %v232, 0.0
      %v237 = vmax.f32 %v233, 0.0
      %v238 = vmax.f32 %v234, 0.0
      %v239 = vpack.c.bf16 %v237, %v235
      %v240 = vpack.c.bf16 %v238, %v236
      %v243 = vunpack.c.l.b16 %v239
      %v244 = vunpack.c.l.b16 %v240
      %v245 = vunpack.c.h.b16 %v239
      %v246 = vunpack.c.h.b16 %v240
      %v247 = vpack.c.b16 %v244, %v243
      %v248 = vpack.c.b16 %v246, %v245
      %vm249 = vsmask.f32 256
      %vm250 = vsmask.f32 4368
      %vm251 = vmor %vm249, %vm250
      %v253 = vshrl.u32 %v247, 16
      %v255 = vrot.slane %v253, 7
      %v256 = vshll.u32 %v247, 16
      %v258 = vor.u32 %v255, %v256
      %v259 = vrot.slane %v255, 4
      %v261 = vshrl.u32 %v248, 16
      %v263 = vrot.slane %v261, 7
      %v264 = vshll.u32 %v248, 16
      %v266 = vor.u32 %v263, %v264
      %v267 = vsel %vm251, %v259, %v266
      %v268 = vrot.slane %v263, 4
      %vm272 = vcmask 1043456
      %vm273 = vsmask.f32 7938
      %vm274 = vmand %vm272, %vm273
      %vm275 = vcmask 1047556
      %vm276 = vsmask.f32 7954
      %vm277 = vmand %vm275, %vm276
      %vm278 = vmor %vm277, %vm274
      %v279 = vld [vmem:[#allocation2] sm:$0xff]
      %v280 = vsel %vm278, %v258, %v279
      %281 = vst [vmem:[#allocation2] sm:$0xff] %v280
      %282 = vst [vmem:[#allocation2 + $0x8] sm:$0xff] %v267
      %vm283 = vcmask 1040384
      %vm284 = vmand %vm283, %vm249
      %vm285 = vcmask 1044484
      %vm286 = vsmask.f32 4352
      %vm287 = vmand %vm285, %vm286
      %vm288 = vmor %vm287, %vm284
      %v289 = vld [vmem:[#allocation2 + $0x10] sm:$0x11]
      %v290 = vsel %vm288, %v268, %v289
      %291 = vst [vmem:[#allocation2 + $0x10] sm:$0x11] %v290
      %v292 = vld [vmem:[#allocation2] sm:$0x11]
      %v293 = vsel %vm288, 0, %v292
      %294 = vst [vmem:[#allocation2] sm:$0x11] %v293
      %vm295 = vmand %vm283, %vm273
      %vm296 = vmand %vm285, %vm276
      %vm297 = vmor %vm296, %vm295
      %v298 = vld [vmem:[#allocation2 + $0x10] sm:$0x11]
      %v299 = vsel %vm297, 0, %v298
      %300 = vst [vmem:[#allocation2 + $0x10] sm:$0x11] %v299
      %v301 = vld [vmem:[#allocation2] sm:$0xff]
      %v302 = vld [vmem:[#allocation2 + $0x8] sm:$0xff]
      %v303 = vld [vmem:[%s3] sm:$0xff]
      %v304 = vld [vmem:[%s3 + $0x8] sm:$0xff]
      %v305 = vld [vmem:[%s3 + $0x10] sm:$0xff]
      %v306 = vld [vmem:[%s3 + $0x18] sm:$0xff]
      %v307 = vld [vmem:[%s3 + $0x20] sm:$0xff]
      %v308 = vld [vmem:[%s3 + $0x28] sm:$0xff]
      %v309 = vld [vmem:[%s3 + $0x30] sm:$0xff]
      %v310 = vld [vmem:[%s3 + $0x38] sm:$0xff]
      %v311 = vld [vmem:[%s3 + $0x40] sm:$0xff]
      %v312 = vld [vmem:[%s3 + $0x48] sm:$0xff]
      %v313 = vld [vmem:[%s3 + $0x50] sm:$0xff]
      %v314 = vld [vmem:[%s3 + $0x58] sm:$0xff]
      %v315 = vld [vmem:[%s3 + $0x60] sm:$0xff]
      %v316 = vld [vmem:[%s3 + $0x68] sm:$0xff]
      %v317 = vld [vmem:[%s3 + $0x70] sm:$0xff]
      %v318 = vld [vmem:[%s3 + $0x78] sm:$0xff]
      %v319 = vld [vmem:[%s3 + $0x80] sm:$0xff]
      %v320 = vld [vmem:[%s3 + $0x88] sm:$0xff]
      %v321 = vld [vmem:[%s3 + $0x90] sm:$0xff]
      %v322 = vld [vmem:[%s3 + $0x98] sm:$0xff]
      %v323 = vld [vmem:[%s3 + $0xa0] sm:$0xff]
      %v324 = vld [vmem:[%s3 + $0xa8] sm:$0xff]
      %v325 = vld [vmem:[%s3 + $0xb0] sm:$0xff]
      %v326 = vld [vmem:[%s3 + $0xb8] sm:$0xff]
      %v327 = vld [vmem:[%s3 + $0xc0] sm:$0xff]
      %v328 = vld [vmem:[%s3 + $0xc8] sm:$0xff]
      %v329 = vld [vmem:[%s3 + $0xd0] sm:$0xff]
      %v330 = vld [vmem:[%s3 + $0xd8] sm:$0xff]
      %v331 = vld [vmem:[%s3 + $0xe0] sm:$0xff]
      %v332 = vld [vmem:[%s3 + $0xe8] sm:$0xff]
      %v333 = vld [vmem:[%s3 + $0xf0] sm:$0xff]
      %v334 = vld [vmem:[%s3 + $0xf8] sm:$0xff]
      %v335 = vld [vmem:[#allocation2 + $0x10] sm:$0x11]
      %s336 = scalar_lea.vmem %s3, 256
      %v337 = vld [vmem:[%s336] sm:$0xff]
      %v338 = vld [vmem:[%s336 + $0x8] sm:$0xff]
      %v339 = vld [vmem:[%s336 + $0x10] sm:$0xff]
      %v340 = vld [vmem:[%s336 + $0x18] sm:$0xff]
      %v341 = vld [vmem:[%s336 + $0x20] sm:$0xff]
      %v342 = vld [vmem:[%s336 + $0x28] sm:$0xff]
      %v343 = vld [vmem:[%s336 + $0x30] sm:$0xff]
      %v344 = vld [vmem:[%s336 + $0x38] sm:$0xff]
      %v345 = vld [vmem:[%s336 + $0x40] sm:$0xff]
      %v346 = vld [vmem:[%s336 + $0x48] sm:$0xff]
      %v347 = vld [vmem:[%s336 + $0x50] sm:$0xff]
      %v348 = vld [vmem:[%s336 + $0x58] sm:$0xff]
      %v349 = vld [vmem:[%s336 + $0x60] sm:$0xff]
      %v350 = vld [vmem:[%s336 + $0x68] sm:$0xff]
      %v351 = vld [vmem:[%s336 + $0x70] sm:$0xff]
      %v352 = vld [vmem:[%s336 + $0x78] sm:$0xff]
      %v353 = vld [vmem:[%s336 + $0x80] sm:$0xff]
      %v354 = vld [vmem:[%s336 + $0x88] sm:$0xff]
      %v355 = vld [vmem:[%s336 + $0x90] sm:$0xff]
      %v356 = vld [vmem:[%s336 + $0x98] sm:$0xff]
      %v357 = vld [vmem:[%s336 + $0xa0] sm:$0xff]
      %v358 = vld [vmem:[%s336 + $0xa8] sm:$0xff]
      %v359 = vld [vmem:[%s336 + $0xb0] sm:$0xff]
      %v360 = vld [vmem:[%s336 + $0xb8] sm:$0xff]
      %v361 = vld [vmem:[%s336 + $0xc0] sm:$0xff]
      %v362 = vld [vmem:[%s336 + $0xc8] sm:$0xff]
      %v363 = vld [vmem:[%s336 + $0xd0] sm:$0xff]
      %v364 = vld [vmem:[%s336 + $0xd8] sm:$0xff]
      %v365 = vld [vmem:[%s336 + $0xe0] sm:$0xff]
      %v366 = vld [vmem:[%s336 + $0xe8] sm:$0xff]
      %v367 = vld [vmem:[%s336 + $0xf0] sm:$0xff]
      %v368 = vld [vmem:[%s336 + $0xf8] sm:$0xff]
      %v372 = vunpack.c.l.b16 %v301
      %v373 = vunpack.c.h.b16 %v301
      %v374 = vunpack.c.l.b16 %v302
      %v375 = vunpack.c.h.b16 %v302
      %v376 = vunpack.c.l.b16 %v335
      %v377 = vunpack.c.h.b16 %v335
      %v378 = vpack.c.b16 %v374, %v372
      %v379 = vpack.c.b16 %v375, %v373
      %v380 = vpack.c.b16 %v376, %v376
      %v381 = vpack.c.b16 %v377, %v377
      %vm382 = vsmask.f32 7424
      %v384 = vshrl.u32 %v378, 16
      %v386 = vshll.u32 %v378, 16
      %v388 = vrot.slane %v386, 1
      %v389 = vor.u32 %v384, %v388
      %v391 = vshll.u32 %v380, 16
      %v393 = vrot.slane %v391, 1
      %v394 = vsel %vm382, %v389, %v393
      %v396 = vshrl.u32 %v379, 16
      %v398 = vshll.u32 %v379, 16
      %v400 = vrot.slane %v398, 1
      %v401 = vor.u32 %v396, %v400
      %v403 = vshll.u32 %v381, 16
      %v405 = vrot.slane %v403, 1
      %v406 = vsel %vm382, %v401, %v405
      %v441 = vunpack.c.l.b16 %v337
      %v442 = vunpack.c.h.b16 %v337
      %v443 = vunpack.c.l.b16 %v338
      %v444 = vunpack.c.h.b16 %v338
      %v445 = vunpack.c.l.b16 %v339
      %v446 = vunpack.c.h.b16 %v339
      %v447 = vunpack.c.l.b16 %v340
      %v448 = vunpack.c.h.b16 %v340
      %v449 = vunpack.c.l.b16 %v341
      %v450 = vunpack.c.h.b16 %v341
      %v451 = vunpack.c.l.b16 %v342
      %v452 = vunpack.c.h.b16 %v342
      %v453 = vunpack.c.l.b16 %v343
      %v454 = vunpack.c.h.b16 %v343
      %v455 = vunpack.c.l.b16 %v344
      %v456 = vunpack.c.h.b16 %v344
      %v457 = vunpack.c.l.b16 %v345
      %v458 = vunpack.c.h.b16 %v345
      %v459 = vunpack.c.l.b16 %v346
      %v460 = vunpack.c.h.b16 %v346
      %v461 = vunpack.c.l.b16 %v347
      %v462 = vunpack.c.h.b16 %v347
      %v463 = vunpack.c.l.b16 %v348
      %v464 = vunpack.c.h.b16 %v348
      %v465 = vunpack.c.l.b16 %v349
      %v466 = vunpack.c.h.b16 %v349
      %v467 = vunpack.c.l.b16 %v350
      %v468 = vunpack.c.h.b16 %v350
      %v469 = vunpack.c.l.b16 %v351
      %v470 = vunpack.c.h.b16 %v351
      %v471 = vunpack.c.l.b16 %v352
      %v472 = vunpack.c.h.b16 %v352
      %v473 = vunpack.c.l.b16 %v353
      %v474 = vunpack.c.h.b16 %v353
      %v475 = vunpack.c.l.b16 %v354
      %v476 = vunpack.c.h.b16 %v354
      %v477 = vunpack.c.l.b16 %v355
      %v478 = vunpack.c.h.b16 %v355
      %v479 = vunpack.c.l.b16 %v356
      %v480 = vunpack.c.h.b16 %v356
      %v481 = vunpack.c.l.b16 %v357
      %v482 = vunpack.c.h.b16 %v357
      %v483 = vunpack.c.l.b16 %v358
      %v484 = vunpack.c.h.b16 %v358
      %v485 = vunpack.c.l.b16 %v359
      %v486 = vunpack.c.h.b16 %v359
      %v487 = vunpack.c.l.b16 %v360
      %v488 = vunpack.c.h.b16 %v360
      %v489 = vunpack.c.l.b16 %v361
      %v490 = vunpack.c.h.b16 %v361
      %v491 = vunpack.c.l.b16 %v362
      %v492 = vunpack.c.h.b16 %v362
      %v493 = vunpack.c.l.b16 %v363
      %v494 = vunpack.c.h.b16 %v363
      %v495 = vunpack.c.l.b16 %v364
      %v496 = vunpack.c.h.b16 %v364
      %v497 = vunpack.c.l.b16 %v365
      %v498 = vunpack.c.h.b16 %v365
      %v499 = vunpack.c.l.b16 %v366
      %v500 = vunpack.c.h.b16 %v366
      %v501 = vunpack.c.l.b16 %v367
      %v502 = vunpack.c.h.b16 %v367
      %v503 = vunpack.c.l.b16 %v368
      %v504 = vunpack.c.h.b16 %v368
      %v505 = vpack.c.b16 %v443, %v441
      %v506 = vpack.c.b16 %v444, %v442
      %v507 = vpack.c.b16 %v447, %v445
      %v508 = vpack.c.b16 %v448, %v446
      %v509 = vpack.c.b16 %v451, %v449
      %v510 = vpack.c.b16 %v452, %v450
      %v511 = vpack.c.b16 %v455, %v453
      %v512 = vpack.c.b16 %v456, %v454
      %v513 = vpack.c.b16 %v459, %v457
      %v514 = vpack.c.b16 %v460, %v458
      %v515 = vpack.c.b16 %v463, %v461
      %v516 = vpack.c.b16 %v464, %v462
      %v517 = vpack.c.b16 %v467, %v465
      %v518 = vpack.c.b16 %v468, %v466
      %v519 = vpack.c.b16 %v471, %v469
      %v520 = vpack.c.b16 %v472, %v470
      %v521 = vpack.c.b16 %v475, %v473
      %v522 = vpack.c.b16 %v476, %v474
      %v523 = vpack.c.b16 %v479, %v477
      %v524 = vpack.c.b16 %v480, %v478
      %v525 = vpack.c.b16 %v483, %v481
      %v526 = vpack.c.b16 %v484, %v482
      %v527 = vpack.c.b16 %v487, %v485
      %v528 = vpack.c.b16 %v488, %v486
      %v529 = vpack.c.b16 %v491, %v489
      %v530 = vpack.c.b16 %v492, %v490
      %v531 = vpack.c.b16 %v495, %v493
      %v532 = vpack.c.b16 %v496, %v494
      %v533 = vpack.c.b16 %v499, %v497
      %v534 = vpack.c.b16 %v500, %v498
      %v535 = vpack.c.b16 %v503, %v501
      %v536 = vpack.c.b16 %v504, %v502
      %569 = vmatprep.subr.bf16.mxu0 %v520
      %570 = vmatpush1.bf16.msra.mxu0 %v519
      %571 = vmatprep.subr.bf16.mxu0 %v518
      %572 = vmatpush1.bf16.msra.mxu0 %v517
      %573 = vmatprep.subr.bf16.mxu0 %v516
      %574 = vmatpush1.bf16.msra.mxu0 %v515
      %575 = vmatprep.subr.bf16.mxu0 %v514
      %576 = vmatpush1.bf16.msra.mxu0 %v513
      %577 = vmatprep.subr.bf16.mxu0 %v512
      %578 = vmatpush1.bf16.msra.mxu0 %v511
      %579 = vmatprep.subr.bf16.mxu0 %v510
      %580 = vmatpush1.bf16.msra.mxu0 %v509
      %581 = vmatprep.subr.bf16.mxu0 %v508
      %582 = vmatpush1.bf16.msra.mxu0 %v507
      %583 = vmatprep.subr.bf16.mxu0 %v506
      %584 = vmatpush1.bf16.msra.mxu0 %v505
      %585 = vmatprep.subr.bf16.mxu0 %v536
      %586 = vmatpush2.bf16.msra.mxu0 %v535
      %587 = vmatprep.subr.bf16.mxu0 %v534
      %588 = vmatpush2.bf16.msra.mxu0 %v533
      %589 = vmatprep.subr.bf16.mxu0 %v532
      %590 = vmatpush2.bf16.msra.mxu0 %v531
      %591 = vmatprep.subr.bf16.mxu0 %v530
      %592 = vmatpush2.bf16.msra.mxu0 %v529
      %593 = vmatprep.subr.bf16.mxu0 %v528
      %594 = vmatpush2.bf16.msra.mxu0 %v527
      %595 = vmatprep.subr.bf16.mxu0 %v526
      %596 = vmatpush2.bf16.msra.mxu0 %v525
      %597 = vmatprep.subr.bf16.mxu0 %v524
      %598 = vmatpush2.bf16.msra.mxu0 %v523
      %599 = vmatprep.subr.bf16.mxu0 %v522
      %600 = vmatpush2.bf16.msra.mxu0 %v521
      %601 = vmatprep.mubr.bf16.mxu0 %v406
      %602 = vmatmul.mubr.bf16.gmra.mxu0 %v394
      %v603 = vpop.f32.mrf.mxu0
      %v604 = vadd.f32 0.0, %v603
      %v605 = vpop.f32.mrf.mxu0
      %v606 = vadd.f32 0.0, %v605
      %v607 = vpop.f32.mrf.mxu0
      %v608 = vadd.f32 0.0, %v607
      %v609 = vpop.f32.mrf.mxu0
      %v610 = vadd.f32 0.0, %v609
      %611 = vdwg.mxu0
      %v646 = vunpack.c.l.b16 %v303
      %v647 = vunpack.c.h.b16 %v303
      %v648 = vunpack.c.l.b16 %v304
      %v649 = vunpack.c.h.b16 %v304
      %v650 = vunpack.c.l.b16 %v305
      %v651 = vunpack.c.h.b16 %v305
      %v652 = vunpack.c.l.b16 %v306
      %v653 = vunpack.c.h.b16 %v306
      %v654 = vunpack.c.l.b16 %v307
      %v655 = vunpack.c.h.b16 %v307
      %v656 = vunpack.c.l.b16 %v308
      %v657 = vunpack.c.h.b16 %v308
      %v658 = vunpack.c.l.b16 %v309
      %v659 = vunpack.c.h.b16 %v309
      %v660 = vunpack.c.l.b16 %v310
      %v661 = vunpack.c.h.b16 %v310
      %v662 = vunpack.c.l.b16 %v311
      %v663 = vunpack.c.h.b16 %v311
      %v664 = vunpack.c.l.b16 %v312
      %v665 = vunpack.c.h.b16 %v312
      %v666 = vunpack.c.l.b16 %v313
      %v667 = vunpack.c.h.b16 %v313
      %v668 = vunpack.c.l.b16 %v314
      %v669 = vunpack.c.h.b16 %v314
      %v670 = vunpack.c.l.b16 %v315
      %v671 = vunpack.c.h.b16 %v315
      %v672 = vunpack.c.l.b16 %v316
      %v673 = vunpack.c.h.b16 %v316
      %v674 = vunpack.c.l.b16 %v317
      %v675 = vunpack.c.h.b16 %v317
      %v676 = vunpack.c.l.b16 %v318
      %v677 = vunpack.c.h.b16 %v318
      %v678 = vunpack.c.l.b16 %v319
      %v679 = vunpack.c.h.b16 %v319
      %v680 = vunpack.c.l.b16 %v320
      %v681 = vunpack.c.h.b16 %v320
      %v682 = vunpack.c.l.b16 %v321
      %v683 = vunpack.c.h.b16 %v321
      %v684 = vunpack.c.l.b16 %v322
      %v685 = vunpack.c.h.b16 %v322
      %v686 = vunpack.c.l.b16 %v323
      %v687 = vunpack.c.h.b16 %v323
      %v688 = vunpack.c.l.b16 %v324
      %v689 = vunpack.c.h.b16 %v324
      %v690 = vunpack.c.l.b16 %v325
      %v691 = vunpack.c.h.b16 %v325
      %v692 = vunpack.c.l.b16 %v326
      %v693 = vunpack.c.h.b16 %v326
      %v694 = vunpack.c.l.b16 %v327
      %v695 = vunpack.c.h.b16 %v327
      %v696 = vunpack.c.l.b16 %v328
      %v697 = vunpack.c.h.b16 %v328
      %v698 = vunpack.c.l.b16 %v329
      %v699 = vunpack.c.h.b16 %v329
      %v700 = vunpack.c.l.b16 %v330
      %v701 = vunpack.c.h.b16 %v330
      %v702 = vunpack.c.l.b16 %v331
      %v703 = vunpack.c.h.b16 %v331
      %v704 = vunpack.c.l.b16 %v332
      %v705 = vunpack.c.h.b16 %v332
      %v706 = vunpack.c.l.b16 %v333
      %v707 = vunpack.c.h.b16 %v333
      %v708 = vunpack.c.l.b16 %v334
      %v709 = vunpack.c.h.b16 %v334
      %v710 = vpack.c.b16 %v648, %v646
      %v711 = vpack.c.b16 %v649, %v647
      %v712 = vpack.c.b16 %v652, %v650
      %v713 = vpack.c.b16 %v653, %v651
      %v714 = vpack.c.b16 %v656, %v654
      %v715 = vpack.c.b16 %v657, %v655
      %v716 = vpack.c.b16 %v660, %v658
      %v717 = vpack.c.b16 %v661, %v659
      %v718 = vpack.c.b16 %v664, %v662
      %v719 = vpack.c.b16 %v665, %v663
      %v720 = vpack.c.b16 %v668, %v666
      %v721 = vpack.c.b16 %v669, %v667
      %v722 = vpack.c.b16 %v672, %v670
      %v723 = vpack.c.b16 %v673, %v671
      %v724 = vpack.c.b16 %v676, %v674
      %v725 = vpack.c.b16 %v677, %v675
      %v726 = vpack.c.b16 %v680, %v678
      %v727 = vpack.c.b16 %v681, %v679
      %v728 = vpack.c.b16 %v684, %v682
      %v729 = vpack.c.b16 %v685, %v683
      %v730 = vpack.c.b16 %v688, %v686
      %v731 = vpack.c.b16 %v689, %v687
      %v732 = vpack.c.b16 %v692, %v690
      %v733 = vpack.c.b16 %v693, %v691
      %v734 = vpack.c.b16 %v696, %v694
      %v735 = vpack.c.b16 %v697, %v695
      %v736 = vpack.c.b16 %v700, %v698
      %v737 = vpack.c.b16 %v701, %v699
      %v738 = vpack.c.b16 %v704, %v702
      %v739 = vpack.c.b16 %v705, %v703
      %v740 = vpack.c.b16 %v708, %v706
      %v741 = vpack.c.b16 %v709, %v707
      %774 = vmatprep.subr.bf16.mxu0 %v725
      %775 = vmatpush1.bf16.msra.mxu0 %v724
      %776 = vmatprep.subr.bf16.mxu0 %v723
      %777 = vmatpush1.bf16.msra.mxu0 %v722
      %778 = vmatprep.subr.bf16.mxu0 %v721
      %779 = vmatpush1.bf16.msra.mxu0 %v720
      %780 = vmatprep.subr.bf16.mxu0 %v719
      %781 = vmatpush1.bf16.msra.mxu0 %v718
      %782 = vmatprep.subr.bf16.mxu0 %v717
      %783 = vmatpush1.bf16.msra.mxu0 %v716
      %784 = vmatprep.subr.bf16.mxu0 %v715
      %785 = vmatpush1.bf16.msra.mxu0 %v714
      %786 = vmatprep.subr.bf16.mxu0 %v713
      %787 = vmatpush1.bf16.msra.mxu0 %v712
      %788 = vmatprep.subr.bf16.mxu0 %v711
      %789 = vmatpush1.bf16.msra.mxu0 %v710
      %790 = vmatprep.subr.bf16.mxu0 %v741
      %791 = vmatpush2.bf16.msra.mxu0 %v740
      %792 = vmatprep.subr.bf16.mxu0 %v739
      %793 = vmatpush2.bf16.msra.mxu0 %v738
      %794 = vmatprep.subr.bf16.mxu0 %v737
      %795 = vmatpush2.bf16.msra.mxu0 %v736
      %796 = vmatprep.subr.bf16.mxu0 %v735
      %797 = vmatpush2.bf16.msra.mxu0 %v734
      %798 = vmatprep.subr.bf16.mxu0 %v733
      %799 = vmatpush2.bf16.msra.mxu0 %v732
      %800 = vmatprep.subr.bf16.mxu0 %v731
      %801 = vmatpush2.bf16.msra.mxu0 %v730
      %802 = vmatprep.subr.bf16.mxu0 %v729
      %803 = vmatpush2.bf16.msra.mxu0 %v728
      %804 = vmatprep.subr.bf16.mxu0 %v727
      %805 = vmatpush2.bf16.msra.mxu0 %v726
      %806 = vmatprep.mubr.bf16.mxu0 %v379
      %807 = vmatmul.mubr.bf16.gmra.mxu0 %v378
      %v808 = vpop.f32.mrf.mxu0
      %v809 = vadd.f32 %v604, %v808
      %v810 = vpop.f32.mrf.mxu0
      %v811 = vadd.f32 %v606, %v810
      %v812 = vpop.f32.mrf.mxu0
      %v813 = vadd.f32 %v608, %v812
      %v814 = vpop.f32.mrf.mxu0
      %v815 = vadd.f32 %v610, %v814
      %816 = vdwg.mxu0
      %v817 = vld [vmem:[#allocation2] sm:$0xee]
      %s818 = scalar_lea.vmem %s3, 512
      %v819 = vld [vmem:[%s818] sm:$0xff]
      %v820 = vld [vmem:[%s818 + $0x8] sm:$0xff]
      %v821 = vld [vmem:[%s818 + $0x10] sm:$0xff]
      %v822 = vld [vmem:[%s818 + $0x18] sm:$0xff]
      %v823 = vld [vmem:[%s818 + $0x20] sm:$0xff]
      %v824 = vld [vmem:[%s818 + $0x28] sm:$0xff]
      %v825 = vld [vmem:[%s818 + $0x30] sm:$0xff]
      %v826 = vld [vmem:[%s818 + $0x38] sm:$0xff]
      %v827 = vld [vmem:[%s818 + $0x40] sm:$0xff]
      %v828 = vld [vmem:[%s818 + $0x48] sm:$0xff]
      %v829 = vld [vmem:[%s818 + $0x50] sm:$0xff]
      %v830 = vld [vmem:[%s818 + $0x58] sm:$0xff]
      %v831 = vld [vmem:[%s818 + $0x60] sm:$0xff]
      %v832 = vld [vmem:[%s818 + $0x68] sm:$0xff]
      %v833 = vld [vmem:[%s818 + $0x70] sm:$0xff]
      %v834 = vld [vmem:[%s818 + $0x78] sm:$0xff]
      %v835 = vld [vmem:[%s818 + $0x80] sm:$0xff]
      %v836 = vld [vmem:[%s818 + $0x88] sm:$0xff]
      %v837 = vld [vmem:[%s818 + $0x90] sm:$0xff]
      %v838 = vld [vmem:[%s818 + $0x98] sm:$0xff]
      %v839 = vld [vmem:[%s818 + $0xa0] sm:$0xff]
      %v840 = vld [vmem:[%s818 + $0xa8] sm:$0xff]
      %v841 = vld [vmem:[%s818 + $0xb0] sm:$0xff]
      %v842 = vld [vmem:[%s818 + $0xb8] sm:$0xff]
      %v843 = vld [vmem:[%s818 + $0xc0] sm:$0xff]
      %v844 = vld [vmem:[%s818 + $0xc8] sm:$0xff]
      %v845 = vld [vmem:[%s818 + $0xd0] sm:$0xff]
      %v846 = vld [vmem:[%s818 + $0xd8] sm:$0xff]
      %v847 = vld [vmem:[%s818 + $0xe0] sm:$0xff]
      %v848 = vld [vmem:[%s818 + $0xe8] sm:$0xff]
      %v849 = vld [vmem:[%s818 + $0xf0] sm:$0xff]
      %v850 = vld [vmem:[%s818 + $0xf8] sm:$0xff]
      %v852 = vunpack.c.l.b16 %v817
      %v853 = vunpack.c.h.b16 %v817
      %v854 = vpack.c.b16 %v374, %v852
      %v855 = vpack.c.b16 %v375, %v853
      %vm856 = vcmask 1046528
      %v857 = vrot.slane %v854, 1
      %v858 = vrot.slane %v380, 1
      %v859 = vsel %vm856, %v857, %v858
      %v860 = vrot.slane %v855, 1
      %v861 = vrot.slane %v381, 1
      %v862 = vsel %vm856, %v860, %v861
      %v897 = vunpack.c.l.b16 %v819
      %v898 = vunpack.c.h.b16 %v819
      %v899 = vunpack.c.l.b16 %v820
      %v900 = vunpack.c.h.b16 %v820
      %v901 = vunpack.c.l.b16 %v821
      %v902 = vunpack.c.h.b16 %v821
      %v903 = vunpack.c.l.b16 %v822
      %v904 = vunpack.c.h.b16 %v822
      %v905 = vunpack.c.l.b16 %v823
      %v906 = vunpack.c.h.b16 %v823
      %v907 = vunpack.c.l.b16 %v824
      %v908 = vunpack.c.h.b16 %v824
      %v909 = vunpack.c.l.b16 %v825
      %v910 = vunpack.c.h.b16 %v825
      %v911 = vunpack.c.l.b16 %v826
      %v912 = vunpack.c.h.b16 %v826
      %v913 = vunpack.c.l.b16 %v827
      %v914 = vunpack.c.h.b16 %v827
      %v915 = vunpack.c.l.b16 %v828
      %v916 = vunpack.c.h.b16 %v828
      %v917 = vunpack.c.l.b16 %v829
      %v918 = vunpack.c.h.b16 %v829
      %v919 = vunpack.c.l.b16 %v830
      %v920 = vunpack.c.h.b16 %v830
      %v921 = vunpack.c.l.b16 %v831
      %v922 = vunpack.c.h.b16 %v831
      %v923 = vunpack.c.l.b16 %v832
      %v924 = vunpack.c.h.b16 %v832
      %v925 = vunpack.c.l.b16 %v833
      %v926 = vunpack.c.h.b16 %v833
      %v927 = vunpack.c.l.b16 %v834
      %v928 = vunpack.c.h.b16 %v834
      %v929 = vunpack.c.l.b16 %v835
      %v930 = vunpack.c.h.b16 %v835
      %v931 = vunpack.c.l.b16 %v836
      %v932 = vunpack.c.h.b16 %v836
      %v933 = vunpack.c.l.b16 %v837
      %v934 = vunpack.c.h.b16 %v837
      %v935 = vunpack.c.l.b16 %v838
      %v936 = vunpack.c.h.b16 %v838
      %v937 = vunpack.c.l.b16 %v839
      %v938 = vunpack.c.h.b16 %v839
      %v939 = vunpack.c.l.b16 %v840
      %v940 = vunpack.c.h.b16 %v840
      %v941 = vunpack.c.l.b16 %v841
      %v942 = vunpack.c.h.b16 %v841
      %v943 = vunpack.c.l.b16 %v842
      %v944 = vunpack.c.h.b16 %v842
      %v945 = vunpack.c.l.b16 %v843
      %v946 = vunpack.c.h.b16 %v843
      %v947 = vunpack.c.l.b16 %v844
      %v948 = vunpack.c.h.b16 %v844
      %v949 = vunpack.c.l.b16 %v845
      %v950 = vunpack.c.h.b16 %v845
      %v951 = vunpack.c.l.b16 %v846
      %v952 = vunpack.c.h.b16 %v846
      %v953 = vunpack.c.l.b16 %v847
      %v954 = vunpack.c.h.b16 %v847
      %v955 = vunpack.c.l.b16 %v848
      %v956 = vunpack.c.h.b16 %v848
      %v957 = vunpack.c.l.b16 %v849
      %v958 = vunpack.c.h.b16 %v849
      %v959 = vunpack.c.l.b16 %v850
      %v960 = vunpack.c.h.b16 %v850
      %v961 = vpack.c.b16 %v899, %v897
      %v962 = vpack.c.b16 %v900, %v898
      %v963 = vpack.c.b16 %v903, %v901
      %v964 = vpack.c.b16 %v904, %v902
      %v965 = vpack.c.b16 %v907, %v905
      %v966 = vpack.c.b16 %v908, %v906
      %v967 = vpack.c.b16 %v911, %v909
      %v968 = vpack.c.b16 %v912, %v910
      %v969 = vpack.c.b16 %v915, %v913
      %v970 = vpack.c.b16 %v916, %v914
      %v971 = vpack.c.b16 %v919, %v917
      %v972 = vpack.c.b16 %v920, %v918
      %v973 = vpack.c.b16 %v923, %v921
      %v974 = vpack.c.b16 %v924, %v922
      %v975 = vpack.c.b16 %v927, %v925
      %v976 = vpack.c.b16 %v928, %v926
      %v977 = vpack.c.b16 %v931, %v929
      %v978 = vpack.c.b16 %v932, %v930
      %v979 = vpack.c.b16 %v935, %v933
      %v980 = vpack.c.b16 %v936, %v934
      %v981 = vpack.c.b16 %v939, %v937
      %v982 = vpack.c.b16 %v940, %v938
      %v983 = vpack.c.b16 %v943, %v941
      %v984 = vpack.c.b16 %v944, %v942
      %v985 = vpack.c.b16 %v947, %v945
      %v986 = vpack.c.b16 %v948, %v946
      %v987 = vpack.c.b16 %v951, %v949
      %v988 = vpack.c.b16 %v952, %v950
      %v989 = vpack.c.b16 %v955, %v953
      %v990 = vpack.c.b16 %v956, %v954
      %v991 = vpack.c.b16 %v959, %v957
      %v992 = vpack.c.b16 %v960, %v958
      %1025 = vmatprep.subr.bf16.mxu0 %v976
      %1026 = vmatpush1.bf16.msra.mxu0 %v975
      %1027 = vmatprep.subr.bf16.mxu0 %v974
      %1028 = vmatpush1.bf16.msra.mxu0 %v973
      %1029 = vmatprep.subr.bf16.mxu0 %v972
      %1030 = vmatpush1.bf16.msra.mxu0 %v971
      %1031 = vmatprep.subr.bf16.mxu0 %v970
      %1032 = vmatpush1.bf16.msra.mxu0 %v969
      %1033 = vmatprep.subr.bf16.mxu0 %v968
      %1034 = vmatpush1.bf16.msra.mxu0 %v967
      %1035 = vmatprep.subr.bf16.mxu0 %v966
      %1036 = vmatpush1.bf16.msra.mxu0 %v965
      %1037 = vmatprep.subr.bf16.mxu0 %v964
      %1038 = vmatpush1.bf16.msra.mxu0 %v963
      %1039 = vmatprep.subr.bf16.mxu0 %v962
      %1040 = vmatpush1.bf16.msra.mxu0 %v961
      %1041 = vmatprep.subr.bf16.mxu0 %v992
      %1042 = vmatpush2.bf16.msra.mxu0 %v991
      %1043 = vmatprep.subr.bf16.mxu0 %v990
      %1044 = vmatpush2.bf16.msra.mxu0 %v989
      %1045 = vmatprep.subr.bf16.mxu0 %v988
      %1046 = vmatpush2.bf16.msra.mxu0 %v987
      %1047 = vmatprep.subr.bf16.mxu0 %v986
      %1048 = vmatpush2.bf16.msra.mxu0 %v985
      %1049 = vmatprep.subr.bf16.mxu0 %v984
      %1050 = vmatpush2.bf16.msra.mxu0 %v983
      %1051 = vmatprep.subr.bf16.mxu0 %v982
      %1052 = vmatpush2.bf16.msra.mxu0 %v981
      %1053 = vmatprep.subr.bf16.mxu0 %v980
      %1054 = vmatpush2.bf16.msra.mxu0 %v979
      %1055 = vmatprep.subr.bf16.mxu0 %v978
      %1056 = vmatpush2.bf16.msra.mxu0 %v977
      %1057 = vmatprep.mubr.bf16.mxu0 %v862
      %1058 = vmatmul.mubr.bf16.gmra.mxu0 %v859
      %v1059 = vpop.f32.mrf.mxu0
      %v1060 = vadd.f32 0.0, %v1059
      %v1061 = vpop.f32.mrf.mxu0
      %v1062 = vadd.f32 0.0, %v1061
      %v1063 = vpop.f32.mrf.mxu0
      %v1064 = vadd.f32 0.0, %v1063
      %v1065 = vpop.f32.mrf.mxu0
      %v1066 = vadd.f32 0.0, %v1065
      %1067 = vdwg.mxu0
      %v1068 = vadd.f32 %v809, %v1060
      %v1069 = vadd.f32 %v811, %v1062
      %v1070 = vadd.f32 %v813, %v1064
      %v1071 = vadd.f32 %v815, %v1066
      %v1072 = vpack.c.bf16 %v1070, %v1068
      %v1073 = vpack.c.bf16 %v1071, %v1069
      %v1076 = vunpack.c.l.b16 %v1072
      %v1077 = vunpack.c.l.b16 %v1073
      %v1078 = vunpack.c.h.b16 %v1072
      %v1079 = vunpack.c.h.b16 %v1073
      %v1080 = vpack.c.b16 %v1077, %v1076
      %v1081 = vpack.c.b16 %v1079, %v1078
      %1084 = vst [vmem:[%s197] sm:$0xff] %v1080
      %1085 = vst [vmem:[%s197 + $0x8] sm:$0xff] %v1081
      %p1086 = scmp.lt.s32.totalorder %s15, 1
      %s1087 = scalar_select %p1086, %s15, 1
      %s1088 = smul.addr %s1087, 4
      %s1089 = smul.addr %s1088, 4
      %s1090 = scalar_lea.vmem %s4, %s1089
      // Predicated region
      $region37: #{wide_basic_block.2} parent=35 // pred_check
        %p1091 = pneg %p122
      $region38: #{wide_basic_block.2} parent=35 // pred_check_branch
        %1093 = sbr.rel (%p1091) target = $region40
      $region39: #{wide_basic_block.2} parent=35 // pred_region
        _
      $region40: #{wide_basic_block.2} parent=35 // pred_fallthru
        _
    $region36: #{wide_basic_block.2} parent=5 // pred_fallthru
      _
    %p1094 = scmp.le.s32.totalorder 2, %s10
    // Predicated region
    $region41: #{wide_basic_block.2} parent=5 // pred_check
      %p1095 = pneg %p1094
    $region42: #{wide_basic_block.2} parent=5 // pred_check_branch
      %1097 = sbr.rel (%p1095) target = $region44
    $region43: #{wide_basic_block.2} parent=5 // pred_region
      %s1098 = ssub.s32 %s10, 2
      // Predicated region
      $region45: #{wide_basic_block.2} parent=43 // pred_check
        %p1099 = pneg %p128
      $region46: #{wide_basic_block.2} parent=43 // pred_check_branch
        %1101 = sbr.rel (%p1099) target = $region48
      $region47: #{wide_basic_block.2} parent=43 // pred_region
        %p1102 = scmp.lt.s32.totalorder %s16, 1
        %s1103 = scalar_select %p1102, %s16, 1
        %s1104 = smul.addr %s1103, 4
        %s1105 = smul.addr %s1104, 4
        %s1106 = scalar_lea.vmem %s4, %s1105
      $region48: #{wide_basic_block.2} parent=43 // pred_fallthru
        _
    $region44: #{wide_basic_block.2} parent=5 // pred_fallthru
      _
  $region6: #{wide_basic_block.2} parent=0 // loop_footer
    %s14 = sadd.s32 1, %s10
  $region7: #{wide_basic_block.2} parent=0 // loop_footer_branch
    %9 = sbr.rel target = $region3
  $region8: #{wide_basic_block.2} parent=0 // loop_exit
    _

// kernel: wide_basic_block.3
$region0: #{wide_basic_block.3}
  #allocation0 [shape = 'u32[]', space=smem, size = 0x4, offset = 0x4, fixed_abs, tag = 'smem constant byte address 0x4 - core index']
  #allocation1 [shape = 'u32[144,128]{1,0:T(1,128)}', space=vmem, size = 0x12000, scoped, tag = 'internal scratch']
  #allocation2 [shape = 'bf16[1,18,256]{2,1,0:T(8,128)(2,1)}', space=vmem, size = 0x3000, scoped, tag = 'scratch operand']
  %s0 = inlined_call_operand.vmem [shape: bf16[1,2,16,256], index: 0, kind: input, shape index: {}]
  %s1 = inlined_call_operand.vmem [shape: f32[1,256], index: 1, kind: input, shape index: {}]
  %s2 = inlined_call_operand.vmem [shape: f32[1,256], index: 2, kind: input, shape index: {}]
  %s3 = inlined_call_operand.vmem [shape: bf16[3,256,256], index: 3, kind: input, shape index: {}]
  %s4 = inlined_call_operand.vmem [shape: f32[2,16,256], index: 4, kind: input, shape index: {}]
  %s5 = inlined_call_operand.vmem [shape: f32[2,16,256], index: 5, kind: output, shape index: {}]
  %s6 = sld [smem:[#allocation0]]
  $region53: #{wide_basic_block.3} parent=0
    _
  %s8 = ssub.s32 1, %s6
  %s9 = scalar_select 0, %s8, %s6
  loop: start=0, step=1, limit=4
  $region2: #{wide_basic_block.3} parent=0 // loop_pre_header
    _
  $region3: #{wide_basic_block.3} parent=0 // loop_header
    %s11 = sphi 0, %s15
    %p12 = scmp.ge.s32.totalorder %s11, 4
    %s21 = sphi 0, %s23
    %s24 = sphi 0, %s21
    %s25 = sphi 0, %s24
    %s41 = sphi 0, %s25
    %s45 = sphi 0, %s45
    %s47 = sphi 0, %s45
    %s48 = sphi 0, %s47
    %s62 = sphi 0, %s48
    %s66 = sphi 0, %s66
    %s68 = sphi 0, %s66
    %s69 = sphi 0, %s68
    %s83 = sphi 0, %s69
    %s87 = sphi 0, %s87
    %s89 = sphi 0, %s87
    %s90 = sphi 0, %s89
    %s104 = sphi 0, %s90
    %s110 = sphi 0, %s112
    %s113 = sphi 0, %s110
    %s114 = sphi 0, %s113
    %s130 = sphi 0, %s114
    %s136 = sphi 0, %s138
    %s139 = sphi 0, %s136
    %s140 = sphi 0, %s139
    %s156 = sphi 0, %s140
  $region4: #{wide_basic_block.3} parent=0 // loop_header_branch
    %14 = sbr.rel (%p12) target = $region8
  $region5: #{wide_basic_block.3} parent=0 // loop_body
    %s16 = ssub.s32 %s11, 1
    %s17 = ssub.s32 %s11, 2
    %s18 = sadd.s32 %s11, 1
    %s19 = ssub.s32 %s11, %s18
    %p20 = scmp.eq.s32.totalorder %s19, 0
    %s22 = sadd.s32 %s21, 1
    %s23 = scalar_select %p20, %s21, %s22
    %p26 = pneg %p20
    %p27 = scmp.eq.s32.totalorder %s11, 1
    %p28 = por %p26, %p27
    %p29 = scmp.ne.s32.totalorder %s21, %s24
    %p30 = scmp.eq.s32.totalorder %s11, 0
    %p31 = por %p29, %p30
    %p32 = scmp.ne.s32.totalorder %s21, %s24
    %p33 = scmp.eq.s32.totalorder %s16, 1
    %p34 = por %p32, %p33
    %p35 = scmp.ne.s32.totalorder %s24, %s25
    %p36 = scmp.eq.s32.totalorder %s16, 0
    %p37 = por %p35, %p36
    %p38 = scmp.ne.s32.totalorder %s24, %s25
    %p39 = scmp.eq.s32.totalorder %s17, 1
    %p40 = por %p38, %p39
    %p42 = scmp.ne.s32.totalorder %s25, %s41
    %p43 = scmp.eq.s32.totalorder %s17, 0
    %p44 = por %p42, %p43
    %s46 = sadd.s32 %s45, 1
    %p49 = scmp.eq.s32.totalorder %s11, 1
    %p50 = scmp.ne.s32.totalorder %s45, %s47
    %p51 = scmp.eq.s32.totalorder %s11, 0
    %p52 = por %p50, %p51
    %p53 = scmp.ne.s32.totalorder %s45, %s47
    %p54 = scmp.eq.s32.totalorder %s16, 1
    %p55 = por %p53, %p54
    %p56 = scmp.ne.s32.totalorder %s47, %s48
    %p57 = scmp.eq.s32.totalorder %s16, 0
    %p58 = por %p56, %p57
    %p59 = scmp.ne.s32.totalorder %s47, %s48
    %p60 = scmp.eq.s32.totalorder %s17, 1
    %p61 = por %p59, %p60
    %p63 = scmp.ne.s32.totalorder %s48, %s62
    %p64 = scmp.eq.s32.totalorder %s17, 0
    %p65 = por %p63, %p64
    %s67 = sadd.s32 %s66, 1
    %p70 = scmp.eq.s32.totalorder %s11, 1
    %p71 = scmp.ne.s32.totalorder %s66, %s68
    %p72 = scmp.eq.s32.totalorder %s11, 0
    %p73 = por %p71, %p72
    %p74 = scmp.ne.s32.totalorder %s66, %s68
    %p75 = scmp.eq.s32.totalorder %s16, 1
    %p76 = por %p74, %p75
    %p77 = scmp.ne.s32.totalorder %s68, %s69
    %p78 = scmp.eq.s32.totalorder %s16, 0
    %p79 = por %p77, %p78
    %p80 = scmp.ne.s32.totalorder %s68, %s69
    %p81 = scmp.eq.s32.totalorder %s17, 1
    %p82 = por %p80, %p81
    %p84 = scmp.ne.s32.totalorder %s69, %s83
    %p85 = scmp.eq.s32.totalorder %s17, 0
    %p86 = por %p84, %p85
    %s88 = sadd.s32 %s87, 1
    %p91 = scmp.eq.s32.totalorder %s11, 1
    %p92 = scmp.ne.s32.totalorder %s87, %s89
    %p93 = scmp.eq.s32.totalorder %s11, 0
    %p94 = por %p92, %p93
    %p95 = scmp.ne.s32.totalorder %s87, %s89
    %p96 = scmp.eq.s32.totalorder %s16, 1
    %p97 = por %p95, %p96
    %p98 = scmp.ne.s32.totalorder %s89, %s90
    %p99 = scmp.eq.s32.totalorder %s16, 0
    %p100 = por %p98, %p99
    %p101 = scmp.ne.s32.totalorder %s89, %s90
    %p102 = scmp.eq.s32.totalorder %s17, 1
    %p103 = por %p101, %p102
    %p105 = scmp.ne.s32.totalorder %s90, %s104
    %p106 = scmp.eq.s32.totalorder %s17, 0
    %p107 = por %p105, %p106
    %s108 = ssub.s32 %s11, %s18
    %p109 = scmp.eq.s32.totalorder %s108, 0
    %s111 = sadd.s32 %s110, 1
    %s112 = scalar_select %p109, %s110, %s111
    %p115 = pneg %p109
    %p116 = scmp.eq.s32.totalorder %s11, 1
    %p117 = por %p115, %p116
    %p118 = scmp.ne.s32.totalorder %s110, %s113
    %p119 = scmp.eq.s32.totalorder %s11, 0
    %p120 = por %p118, %p119
    %p121 = scmp.ne.s32.totalorder %s110, %s113
    %p122 = scmp.eq.s32.totalorder %s16, 1
    %p123 = por %p121, %p122
    %p124 = scmp.ne.s32.totalorder %s113, %s114
    %p125 = scmp.eq.s32.totalorder %s16, 0
    %p126 = por %p124, %p125
    %p127 = scmp.ne.s32.totalorder %s113, %s114
    %p128 = scmp.eq.s32.totalorder %s17, 1
    %p129 = por %p127, %p128
    %p131 = scmp.ne.s32.totalorder %s114, %s130
    %p132 = scmp.eq.s32.totalorder %s17, 0
    %p133 = por %p131, %p132
    %s134 = ssub.s32 %s11, %s18
    %p135 = scmp.eq.s32.totalorder %s134, 0
    %s137 = sadd.s32 %s136, 1
    %s138 = scalar_select %p135, %s136, %s137
    %p141 = pneg %p135
    %p142 = scmp.eq.s32.totalorder %s11, 1
    %p143 = por %p141, %p142
    %p144 = scmp.ne.s32.totalorder %s136, %s139
    %p145 = scmp.eq.s32.totalorder %s11, 0
    %p146 = por %p144, %p145
    %p147 = scmp.ne.s32.totalorder %s136, %s139
    %p148 = scmp.eq.s32.totalorder %s16, 1
    %p149 = por %p147, %p148
    %p150 = scmp.ne.s32.totalorder %s139, %s140
    %p151 = scmp.eq.s32.totalorder %s16, 0
    %p152 = por %p150, %p151
    %p153 = scmp.ne.s32.totalorder %s139, %s140
    %p154 = scmp.eq.s32.totalorder %s17, 1
    %p155 = por %p153, %p154
    %p157 = scmp.ne.s32.totalorder %s140, %s156
    %p158 = scmp.eq.s32.totalorder %s17, 0
    %p159 = por %p157, %p158
    %p160 = scmp.le.s32.totalorder 1, %s11
    %p161 = scmp.lt.s32.totalorder %s11, 3
    %p162 = pnand %p160, %p161
    %p163 = pneg %p162
    // Predicated region
    $region9: #{wide_basic_block.3} parent=5 // pred_check
      _
    $region10: #{wide_basic_block.3} parent=5 // pred_check_branch
      %165 = sbr.rel (%p162) target = $region12
    $region11: #{wide_basic_block.3} parent=5 // pred_region
      %s166 = ssub.s32 %s11, 1
      // Predicated region
      $region13: #{wide_basic_block.3} parent=11 // pred_check
        %p167 = pneg %p58
      $region14: #{wide_basic_block.3} parent=11 // pred_check_branch
        %169 = sbr.rel (%p167) target = $region16
      $region15: #{wide_basic_block.3} parent=11 // pred_region
        _
      $region16: #{wide_basic_block.3} parent=11 // pred_fallthru
        _
      // Predicated region
      $region17: #{wide_basic_block.3} parent=11 // pred_check
        %p170 = pneg %p79
      $region18: #{wide_basic_block.3} parent=11 // pred_check_branch
        %172 = sbr.rel (%p170) target = $region20
      $region19: #{wide_basic_block.3} parent=11 // pred_region
        _
      $region20: #{wide_basic_block.3} parent=11 // pred_fallthru
        _
      // Predicated region
      $region21: #{wide_basic_block.3} parent=11 // pred_check
        %p173 = pneg %p100
      $region22: #{wide_basic_block.3} parent=11 // pred_check_branch
        %175 = sbr.rel (%p173) target = $region24
      $region23: #{wide_basic_block.3} parent=11 // pred_region
        _
      $region24: #{wide_basic_block.3} parent=11 // pred_fallthru
        _
    $region12: #{wide_basic_block.3} parent=5 // pred_fallthru
      _
    %p176 = scmp.lt.s32.totalorder %s11, 2
    // Predicated region
    $region25: #{wide_basic_block.3} parent=5 // pred_check
      %p177 = pneg %p176
    $region26: #{wide_basic_block.3} parent=5 // pred_check_branch
      %179 = sbr.rel (%p177) target = $region28
    $region27: #{wide_basic_block.3} parent=5 // pred_region
      // Predicated region
      $region29: #{wide_basic_block.3} parent=27 // pred_check
        %p180 = pneg %p31
      $region30: #{wide_basic_block.3} parent=27 // pred_check_branch
        %182 = sbr.rel (%p180) target = $region32
      $region31: #{wide_basic_block.3} parent=27 // pred_region
        %p183 = scmp.lt.s32.totalorder %s11, 1
        %s184 = scalar_select %p183, %s11, 1
        %s185 = smul.addr %s184, 4
        %s186 = smul.addr %s185, 4
        %s187 = scalar_lea.vmem %s0, %s186
      $region32: #{wide_basic_block.3} parent=27 // pred_fallthru
        _
      // Predicated region
      $region33: #{wide_basic_block.3} parent=27 // pred_check
        %p188 = pneg %p120
      $region34: #{wide_basic_block.3} parent=27 // pred_check_branch
        %190 = sbr.rel (%p188) target = $region36
      $region35: #{wide_basic_block.3} parent=27 // pred_region
        %p191 = scmp.lt.s32.totalorder %s11, 1
        %s192 = scalar_select %p191, %s11, 1
        %s193 = smul.addr %s192, 4
        %s194 = smul.addr %s193, 8
        %s195 = scalar_lea.vmem %s4, %s194
      $region36: #{wide_basic_block.3} parent=27 // pred_fallthru
        _
    $region28: #{wide_basic_block.3} parent=5 // pred_fallthru
      _
    %p196 = scmp.le.s32.totalorder 1, %s11
    %p197 = scmp.lt.s32.totalorder %s11, 3
    %p198 = pnand %p196, %p197
    %p199 = pneg %p198
    // Predicated region
    $region37: #{wide_basic_block.3} parent=5 // pred_check
      _
    $region38: #{wide_basic_block.3} parent=5 // pred_check_branch
      %201 = sbr.rel (%p198) target = $region40
    $region39: #{wide_basic_block.3} parent=5 // pred_region
      %s202 = ssub.s32 %s11, 1
      %p203 = scmp.lt.s32.totalorder %s16, 1
      %s204 = scalar_select %p203, %s16, 1
      %s205 = smul.addr %s204, 4
      %s206 = smul.addr %s205, 4
      %s207 = scalar_lea.vmem %s0, %s206
      %p208 = pneg %p37
      %p209 = pneg %p34
      %p210 = pneg %p58
      %p211 = pneg %p55
      %p212 = pneg %p79
      %p213 = pneg %p76
      %p214 = pneg %p100
      %p215 = pneg %p97
      %p216 = scmp.lt.s32.totalorder %s16, 1
      %s217 = scalar_select %p216, %s16, 1
      %s218 = smul.addr %s217, 4
      %s219 = smul.addr %s218, 8
      %s220 = scalar_lea.vmem %s4, %s219
      %p221 = pneg %p126
      %p222 = pneg %p123
      %p223 = pneg %p152
      %p224 = pneg %p149
      %p225 = scmp.lt.s32.totalorder %s16, 1
      %s226 = scalar_select %p225, %s16, 1
      %s227 = smul.addr %s226, 4
      %s228 = smul.addr %s227, 8
      %s229 = scalar_lea.vmem %s5, %s228
      %p230 = scmp.lt.s32.totalorder %s16, 1
      %s231 = scalar_select %p230, %s16, 1
      %s232 = smul.addr %s231, 4
      %s233 = smul.addr %s232, 4
      %s234 = scalar_lea.vmem %s0, %s233
      %p235 = scmp.lt.s32.totalorder %s16, 1
      %s236 = scalar_select %p235, %s16, 1
      %s237 = smul.addr %s236, 4
      %s238 = smul.addr %s237, 8
      %s239 = scalar_lea.vmem %s4, %s238
      %p240 = scmp.lt.s32.totalorder %s16, 1
      %s241 = scalar_select %p240, %s16, 1
      %s242 = smul.addr %s241, 4
      %s243 = smul.addr %s242, 8
      %s244 = scalar_lea.vmem %s5, %s243
      %v246 = vld [vmem:[%s1] sm:$0x3]
      %v247 = vld [vmem:[%s2] sm:$0x3]
      %v248 = vld [vmem:[%s234] sm:$0xff]
      %v249 = vld [vmem:[%s234 + $0x8] sm:$0xff]
      %v250 = vunpack.c.l.bf16 %v248
      %v251 = vunpack.c.h.bf16 %v248
      %v252 = vunpack.c.l.bf16 %v249
      %v253 = vunpack.c.h.bf16 %v249
      %v255 = vlaneseq
      %v256 = vshrl.u32 %v255, 7
      %v257 = vsub.s32 0, %v256
      %v258 = vrot.slane %v246, %v257
      %v259 = vlaneseq
      %v260 = vshrl.u32 %v259, 7
      %v261 = vsub.s32 1, %v260
      %v262 = vrot.slane %v246, %v261
      %v265 = vmul.f32 %v250, %v258
      %v266 = vmul.f32 %v251, %v262
      %v267 = vmul.f32 %v252, %v258
      %v268 = vmul.f32 %v253, %v262
      %v270 = vlaneseq
      %v271 = vshrl.u32 %v270, 7
      %v272 = vsub.s32 0, %v271
      %v273 = vrot.slane %v247, %v272
      %v274 = vlaneseq
      %v275 = vshrl.u32 %v274, 7
      %v276 = vsub.s32 1, %v275
      %v277 = vrot.slane %v247, %v276
      %v280 = vadd.f32 %v265, %v273
      %v281 = vadd.f32 %v266, %v277
      %v282 = vadd.f32 %v267, %v273
      %v283 = vadd.f32 %v268, %v277
      %v284 = vmax.f32 %v280, 0.0
      %v285 = vmax.f32 %v281, 0.0
      %v286 = vmax.f32 %v282, 0.0
      %v287 = vmax.f32 %v283, 0.0
      %v288 = vpack.c.bf16 %v286, %v284
      %v289 = vpack.c.bf16 %v287, %v285
      %v292 = vunpack.c.l.b16 %v288
      %v293 = vunpack.c.l.b16 %v289
      %v294 = vunpack.c.h.b16 %v288
      %v295 = vunpack.c.h.b16 %v289
      %v296 = vpack.c.b16 %v293, %v292
      %v297 = vpack.c.b16 %v295, %v294
      %vm298 = vsmask.f32 256
      %vm299 = vsmask.f32 4368
      %vm300 = vmor %vm298, %vm299
      %v302 = vshrl.u32 %v296, 16
      %v304 = vrot.slane %v302, 7
      %v305 = vshll.u32 %v296, 16
      %v307 = vor.u32 %v304, %v305
      %v308 = vrot.slane %v304, 4
      %v310 = vshrl.u32 %v297, 16
      %v312 = vrot.slane %v310, 7
      %v313 = vshll.u32 %v297, 16
      %v315 = vor.u32 %v312, %v313
      %v316 = vsel %vm300, %v308, %v315
      %v317 = vrot.slane %v312, 4
      %vm321 = vcmask 1043456
      %vm322 = vsmask.f32 7938
      %vm323 = vmand %vm321, %vm322
      %vm324 = vcmask 1047556
      %vm325 = vsmask.f32 7954
      %vm326 = vmand %vm324, %vm325
      %vm327 = vmor %vm326, %vm323
      %v328 = vld [vmem:[#allocation2] sm:$0xff]
      %v329 = vsel %vm327, %v307, %v328
      %330 = vst [vmem:[#allocation2] sm:$0xff] %v329
      %331 = vst [vmem:[#allocation2 + $0x8] sm:$0xff] %v316
      %vm332 = vcmask 1040384
      %vm333 = vmand %vm332, %vm298
      %vm334 = vcmask 1044484
      %vm335 = vsmask.f32 4352
      %vm336 = vmand %vm334, %vm335
      %vm337 = vmor %vm336, %vm333
      %v338 = vld [vmem:[#allocation2 + $0x10] sm:$0x11]
      %v339 = vsel %vm337, %v317, %v338
      %340 = vst [vmem:[#allocation2 + $0x10] sm:$0x11] %v339
      %v341 = vld [vmem:[#allocation2] sm:$0x11]
      %v342 = vsel %vm337, 0, %v341
      %343 = vst [vmem:[#allocation2] sm:$0x11] %v342
      %vm344 = vmand %vm332, %vm322
      %vm345 = vmand %vm334, %vm325
      %vm346 = vmor %vm345, %vm344
      %v347 = vld [vmem:[#allocation2 + $0x10] sm:$0x11]
      %v348 = vsel %vm346, 0, %v347
      %349 = vst [vmem:[#allocation2 + $0x10] sm:$0x11] %v348
      %v350 = vld [vmem:[#allocation2] sm:$0xff]
      %v351 = vld [vmem:[#allocation2 + $0x8] sm:$0xff]
      %v352 = vld [vmem:[%s3] sm:$0xff]
      %v353 = vld [vmem:[%s3 + $0x8] sm:$0xff]
      %v354 = vld [vmem:[%s3 + $0x10] sm:$0xff]
      %v355 = vld [vmem:[%s3 + $0x18] sm:$0xff]
      %v356 = vld [vmem:[%s3 + $0x20] sm:$0xff]
      %v357 = vld [vmem:[%s3 + $0x28] sm:$0xff]
      %v358 = vld [vmem:[%s3 + $0x30] sm:$0xff]
      %v359 = vld [vmem:[%s3 + $0x38] sm:$0xff]
      %v360 = vld [vmem:[%s3 + $0x40] sm:$0xff]
      %v361 = vld [vmem:[%s3 + $0x48] sm:$0xff]
      %v362 = vld [vmem:[%s3 + $0x50] sm:$0xff]
      %v363 = vld [vmem:[%s3 + $0x58] sm:$0xff]
      %v364 = vld [vmem:[%s3 + $0x60] sm:$0xff]
      %v365 = vld [vmem:[%s3 + $0x68] sm:$0xff]
      %v366 = vld [vmem:[%s3 + $0x70] sm:$0xff]
      %v367 = vld [vmem:[%s3 + $0x78] sm:$0xff]
      %v368 = vld [vmem:[%s3 + $0x80] sm:$0xff]
      %v369 = vld [vmem:[%s3 + $0x88] sm:$0xff]
      %v370 = vld [vmem:[%s3 + $0x90] sm:$0xff]
      %v371 = vld [vmem:[%s3 + $0x98] sm:$0xff]
      %v372 = vld [vmem:[%s3 + $0xa0] sm:$0xff]
      %v373 = vld [vmem:[%s3 + $0xa8] sm:$0xff]
      %v374 = vld [vmem:[%s3 + $0xb0] sm:$0xff]
      %v375 = vld [vmem:[%s3 + $0xb8] sm:$0xff]
      %v376 = vld [vmem:[%s3 + $0xc0] sm:$0xff]
      %v377 = vld [vmem:[%s3 + $0xc8] sm:$0xff]
      %v378 = vld [vmem:[%s3 + $0xd0] sm:$0xff]
      %v379 = vld [vmem:[%s3 + $0xd8] sm:$0xff]
      %v380 = vld [vmem:[%s3 + $0xe0] sm:$0xff]
      %v381 = vld [vmem:[%s3 + $0xe8] sm:$0xff]
      %v382 = vld [vmem:[%s3 + $0xf0] sm:$0xff]
      %v383 = vld [vmem:[%s3 + $0xf8] sm:$0xff]
      %v384 = vld [vmem:[#allocation2 + $0x10] sm:$0x11]
      %s385 = scalar_lea.vmem %s3, 256
      %v386 = vld [vmem:[%s385] sm:$0xff]
      %v387 = vld [vmem:[%s385 + $0x8] sm:$0xff]
      %v388 = vld [vmem:[%s385 + $0x10] sm:$0xff]
      %v389 = vld [vmem:[%s385 + $0x18] sm:$0xff]
      %v390 = vld [vmem:[%s385 + $0x20] sm:$0xff]
      %v391 = vld [vmem:[%s385 + $0x28] sm:$0xff]
      %v392 = vld [vmem:[%s385 + $0x30] sm:$0xff]
      %v393 = vld [vmem:[%s385 + $0x38] sm:$0xff]
      %v394 = vld [vmem:[%s385 + $0x40] sm:$0xff]
      %v395 = vld [vmem:[%s385 + $0x48] sm:$0xff]
      %v396 = vld [vmem:[%s385 + $0x50] sm:$0xff]
      %v397 = vld [vmem:[%s385 + $0x58] sm:$0xff]
      %v398 = vld [vmem:[%s385 + $0x60] sm:$0xff]
      %v399 = vld [vmem:[%s385 + $0x68] sm:$0xff]
      %v400 = vld [vmem:[%s385 + $0x70] sm:$0xff]
      %v401 = vld [vmem:[%s385 + $0x78] sm:$0xff]
      %v402 = vld [vmem:[%s385 + $0x80] sm:$0xff]
      %v403 = vld [vmem:[%s385 + $0x88] sm:$0xff]
      %v404 = vld [vmem:[%s385 + $0x90] sm:$0xff]
      %v405 = vld [vmem:[%s385 + $0x98] sm:$0xff]
      %v406 = vld [vmem:[%s385 + $0xa0] sm:$0xff]
      %v407 = vld [vmem:[%s385 + $0xa8] sm:$0xff]
      %v408 = vld [vmem:[%s385 + $0xb0] sm:$0xff]
      %v409 = vld [vmem:[%s385 + $0xb8] sm:$0xff]
      %v410 = vld [vmem:[%s385 + $0xc0] sm:$0xff]
      %v411 = vld [vmem:[%s385 + $0xc8] sm:$0xff]
      %v412 = vld [vmem:[%s385 + $0xd0] sm:$0xff]
      %v413 = vld [vmem:[%s385 + $0xd8] sm:$0xff]
      %v414 = vld [vmem:[%s385 + $0xe0] sm:$0xff]
      %v415 = vld [vmem:[%s385 + $0xe8] sm:$0xff]
      %v416 = vld [vmem:[%s385 + $0xf0] sm:$0xff]
      %v417 = vld [vmem:[%s385 + $0xf8] sm:$0xff]
      %v421 = vunpack.c.l.b16 %v350
      %v422 = vunpack.c.h.b16 %v350
      %v423 = vunpack.c.l.b16 %v351
      %v424 = vunpack.c.h.b16 %v351
      %v425 = vunpack.c.l.b16 %v384
      %v426 = vunpack.c.h.b16 %v384
      %v427 = vpack.c.b16 %v423, %v421
      %v428 = vpack.c.b16 %v424, %v422
      %v429 = vpack.c.b16 %v425, %v425
      %v430 = vpack.c.b16 %v426, %v426
      %vm431 = vsmask.f32 7424
      %v433 = vshrl.u32 %v427, 16
      %v435 = vshll.u32 %v427, 16
      %v437 = vrot.slane %v435, 1
      %v438 = vor.u32 %v433, %v437
      %v440 = vshll.u32 %v429, 16
      %v442 = vrot.slane %v440, 1
      %v443 = vsel %vm431, %v438, %v442
      %v445 = vshrl.u32 %v428, 16
      %v447 = vshll.u32 %v428, 16
      %v449 = vrot.slane %v447, 1
      %v450 = vor.u32 %v445, %v449
      %v452 = vshll.u32 %v430, 16
      %v454 = vrot.slane %v452, 1
      %v455 = vsel %vm431, %v450, %v454
      %v490 = vunpack.c.l.b16 %v386
      %v491 = vunpack.c.h.b16 %v386
      %v492 = vunpack.c.l.b16 %v387
      %v493 = vunpack.c.h.b16 %v387
      %v494 = vunpack.c.l.b16 %v388
      %v495 = vunpack.c.h.b16 %v388
      %v496 = vunpack.c.l.b16 %v389
      %v497 = vunpack.c.h.b16 %v389
      %v498 = vunpack.c.l.b16 %v390
      %v499 = vunpack.c.h.b16 %v390
      %v500 = vunpack.c.l.b16 %v391
      %v501 = vunpack.c.h.b16 %v391
      %v502 = vunpack.c.l.b16 %v392
      %v503 = vunpack.c.h.b16 %v392
      %v504 = vunpack.c.l.b16 %v393
      %v505 = vunpack.c.h.b16 %v393
      %v506 = vunpack.c.l.b16 %v394
      %v507 = vunpack.c.h.b16 %v394
      %v508 = vunpack.c.l.b16 %v395
      %v509 = vunpack.c.h.b16 %v395
      %v510 = vunpack.c.l.b16 %v396
      %v511 = vunpack.c.h.b16 %v396
      %v512 = vunpack.c.l.b16 %v397
      %v513 = vunpack.c.h.b16 %v397
      %v514 = vunpack.c.l.b16 %v398
      %v515 = vunpack.c.h.b16 %v398
      %v516 = vunpack.c.l.b16 %v399
      %v517 = vunpack.c.h.b16 %v399
      %v518 = vunpack.c.l.b16 %v400
      %v519 = vunpack.c.h.b16 %v400
      %v520 = vunpack.c.l.b16 %v401
      %v521 = vunpack.c.h.b16 %v401
      %v522 = vunpack.c.l.b16 %v402
      %v523 = vunpack.c.h.b16 %v402
      %v524 = vunpack.c.l.b16 %v403
      %v525 = vunpack.c.h.b16 %v403
      %v526 = vunpack.c.l.b16 %v404
      %v527 = vunpack.c.h.b16 %v404
      %v528 = vunpack.c.l.b16 %v405
      %v529 = vunpack.c.h.b16 %v405
      %v530 = vunpack.c.l.b16 %v406
      %v531 = vunpack.c.h.b16 %v406
      %v532 = vunpack.c.l.b16 %v407
      %v533 = vunpack.c.h.b16 %v407
      %v534 = vunpack.c.l.b16 %v408
      %v535 = vunpack.c.h.b16 %v408
      %v536 = vunpack.c.l.b16 %v409
      %v537 = vunpack.c.h.b16 %v409
      %v538 = vunpack.c.l.b16 %v410
      %v539 = vunpack.c.h.b16 %v410
      %v540 = vunpack.c.l.b16 %v411
      %v541 = vunpack.c.h.b16 %v411
      %v542 = vunpack.c.l.b16 %v412
      %v543 = vunpack.c.h.b16 %v412
      %v544 = vunpack.c.l.b16 %v413
      %v545 = vunpack.c.h.b16 %v413
      %v546 = vunpack.c.l.b16 %v414
      %v547 = vunpack.c.h.b16 %v414
      %v548 = vunpack.c.l.b16 %v415
      %v549 = vunpack.c.h.b16 %v415
      %v550 = vunpack.c.l.b16 %v416
      %v551 = vunpack.c.h.b16 %v416
      %v552 = vunpack.c.l.b16 %v417
      %v553 = vunpack.c.h.b16 %v417
      %v554 = vpack.c.b16 %v492, %v490
      %v555 = vpack.c.b16 %v493, %v491
      %v556 = vpack.c.b16 %v496, %v494
      %v557 = vpack.c.b16 %v497, %v495
      %v558 = vpack.c.b16 %v500, %v498
      %v559 = vpack.c.b16 %v501, %v499
      %v560 = vpack.c.b16 %v504, %v502
      %v561 = vpack.c.b16 %v505, %v503
      %v562 = vpack.c.b16 %v508, %v506
      %v563 = vpack.c.b16 %v509, %v507
      %v564 = vpack.c.b16 %v512, %v510
      %v565 = vpack.c.b16 %v513, %v511
      %v566 = vpack.c.b16 %v516, %v514
      %v567 = vpack.c.b16 %v517, %v515
      %v568 = vpack.c.b16 %v520, %v518
      %v569 = vpack.c.b16 %v521, %v519
      %v570 = vpack.c.b16 %v524, %v522
      %v571 = vpack.c.b16 %v525, %v523
      %v572 = vpack.c.b16 %v528, %v526
      %v573 = vpack.c.b16 %v529, %v527
      %v574 = vpack.c.b16 %v532, %v530
      %v575 = vpack.c.b16 %v533, %v531
      %v576 = vpack.c.b16 %v536, %v534
      %v577 = vpack.c.b16 %v537, %v535
      %v578 = vpack.c.b16 %v540, %v538
      %v579 = vpack.c.b16 %v541, %v539
      %v580 = vpack.c.b16 %v544, %v542
      %v581 = vpack.c.b16 %v545, %v543
      %v582 = vpack.c.b16 %v548, %v546
      %v583 = vpack.c.b16 %v549, %v547
      %v584 = vpack.c.b16 %v552, %v550
      %v585 = vpack.c.b16 %v553, %v551
      %618 = vmatprep.subr.bf16.mxu0 %v569
      %619 = vmatpush1.bf16.msra.mxu0 %v568
      %620 = vmatprep.subr.bf16.mxu0 %v567
      %621 = vmatpush1.bf16.msra.mxu0 %v566
      %622 = vmatprep.subr.bf16.mxu0 %v565
      %623 = vmatpush1.bf16.msra.mxu0 %v564
      %624 = vmatprep.subr.bf16.mxu0 %v563
      %625 = vmatpush1.bf16.msra.mxu0 %v562
      %626 = vmatprep.subr.bf16.mxu0 %v561
      %627 = vmatpush1.bf16.msra.mxu0 %v560
      %628 = vmatprep.subr.bf16.mxu0 %v559
      %629 = vmatpush1.bf16.msra.mxu0 %v558
      %630 = vmatprep.subr.bf16.mxu0 %v557
      %631 = vmatpush1.bf16.msra.mxu0 %v556
      %632 = vmatprep.subr.bf16.mxu0 %v555
      %633 = vmatpush1.bf16.msra.mxu0 %v554
      %634 = vmatprep.subr.bf16.mxu0 %v585
      %635 = vmatpush2.bf16.msra.mxu0 %v584
      %636 = vmatprep.subr.bf16.mxu0 %v583
      %637 = vmatpush2.bf16.msra.mxu0 %v582
      %638 = vmatprep.subr.bf16.mxu0 %v581
      %639 = vmatpush2.bf16.msra.mxu0 %v580
      %640 = vmatprep.subr.bf16.mxu0 %v579
      %641 = vmatpush2.bf16.msra.mxu0 %v578
      %642 = vmatprep.subr.bf16.mxu0 %v577
      %643 = vmatpush2.bf16.msra.mxu0 %v576
      %644 = vmatprep.subr.bf16.mxu0 %v575
      %645 = vmatpush2.bf16.msra.mxu0 %v574
      %646 = vmatprep.subr.bf16.mxu0 %v573
      %647 = vmatpush2.bf16.msra.mxu0 %v572
      %648 = vmatprep.subr.bf16.mxu0 %v571
      %649 = vmatpush2.bf16.msra.mxu0 %v570
      %650 = vmatprep.mubr.bf16.mxu0 %v455
      %651 = vmatmul.mubr.bf16.gmra.mxu0 %v443
      %v652 = vpop.f32.mrf.mxu0
      %v653 = vadd.f32 0.0, %v652
      %v654 = vpop.f32.mrf.mxu0
      %v655 = vadd.f32 0.0, %v654
      %v656 = vpop.f32.mrf.mxu0
      %v657 = vadd.f32 0.0, %v656
      %v658 = vpop.f32.mrf.mxu0
      %v659 = vadd.f32 0.0, %v658
      %660 = vdwg.mxu0
      %v695 = vunpack.c.l.b16 %v352
      %v696 = vunpack.c.h.b16 %v352
      %v697 = vunpack.c.l.b16 %v353
      %v698 = vunpack.c.h.b16 %v353
      %v699 = vunpack.c.l.b16 %v354
      %v700 = vunpack.c.h.b16 %v354
      %v701 = vunpack.c.l.b16 %v355
      %v702 = vunpack.c.h.b16 %v355
      %v703 = vunpack.c.l.b16 %v356
      %v704 = vunpack.c.h.b16 %v356
      %v705 = vunpack.c.l.b16 %v357
      %v706 = vunpack.c.h.b16 %v357
      %v707 = vunpack.c.l.b16 %v358
      %v708 = vunpack.c.h.b16 %v358
      %v709 = vunpack.c.l.b16 %v359
      %v710 = vunpack.c.h.b16 %v359
      %v711 = vunpack.c.l.b16 %v360
      %v712 = vunpack.c.h.b16 %v360
      %v713 = vunpack.c.l.b16 %v361
      %v714 = vunpack.c.h.b16 %v361
      %v715 = vunpack.c.l.b16 %v362
      %v716 = vunpack.c.h.b16 %v362
      %v717 = vunpack.c.l.b16 %v363
      %v718 = vunpack.c.h.b16 %v363
      %v719 = vunpack.c.l.b16 %v364
      %v720 = vunpack.c.h.b16 %v364
      %v721 = vunpack.c.l.b16 %v365
      %v722 = vunpack.c.h.b16 %v365
      %v723 = vunpack.c.l.b16 %v366
      %v724 = vunpack.c.h.b16 %v366
      %v725 = vunpack.c.l.b16 %v367
      %v726 = vunpack.c.h.b16 %v367
      %v727 = vunpack.c.l.b16 %v368
      %v728 = vunpack.c.h.b16 %v368
      %v729 = vunpack.c.l.b16 %v369
      %v730 = vunpack.c.h.b16 %v369
      %v731 = vunpack.c.l.b16 %v370
      %v732 = vunpack.c.h.b16 %v370
      %v733 = vunpack.c.l.b16 %v371
      %v734 = vunpack.c.h.b16 %v371
      %v735 = vunpack.c.l.b16 %v372
      %v736 = vunpack.c.h.b16 %v372
      %v737 = vunpack.c.l.b16 %v373
      %v738 = vunpack.c.h.b16 %v373
      %v739 = vunpack.c.l.b16 %v374
      %v740 = vunpack.c.h.b16 %v374
      %v741 = vunpack.c.l.b16 %v375
      %v742 = vunpack.c.h.b16 %v375
      %v743 = vunpack.c.l.b16 %v376
      %v744 = vunpack.c.h.b16 %v376
      %v745 = vunpack.c.l.b16 %v377
      %v746 = vunpack.c.h.b16 %v377
      %v747 = vunpack.c.l.b16 %v378
      %v748 = vunpack.c.h.b16 %v378
      %v749 = vunpack.c.l.b16 %v379
      %v750 = vunpack.c.h.b16 %v379
      %v751 = vunpack.c.l.b16 %v380
      %v752 = vunpack.c.h.b16 %v380
      %v753 = vunpack.c.l.b16 %v381
      %v754 = vunpack.c.h.b16 %v381
      %v755 = vunpack.c.l.b16 %v382
      %v756 = vunpack.c.h.b16 %v382
      %v757 = vunpack.c.l.b16 %v383
      %v758 = vunpack.c.h.b16 %v383
      %v759 = vpack.c.b16 %v697, %v695
      %v760 = vpack.c.b16 %v698, %v696
      %v761 = vpack.c.b16 %v701, %v699
      %v762 = vpack.c.b16 %v702, %v700
      %v763 = vpack.c.b16 %v705, %v703
      %v764 = vpack.c.b16 %v706, %v704
      %v765 = vpack.c.b16 %v709, %v707
      %v766 = vpack.c.b16 %v710, %v708
      %v767 = vpack.c.b16 %v713, %v711
      %v768 = vpack.c.b16 %v714, %v712
      %v769 = vpack.c.b16 %v717, %v715
      %v770 = vpack.c.b16 %v718, %v716
      %v771 = vpack.c.b16 %v721, %v719
      %v772 = vpack.c.b16 %v722, %v720
      %v773 = vpack.c.b16 %v725, %v723
      %v774 = vpack.c.b16 %v726, %v724
      %v775 = vpack.c.b16 %v729, %v727
      %v776 = vpack.c.b16 %v730, %v728
      %v777 = vpack.c.b16 %v733, %v731
      %v778 = vpack.c.b16 %v734, %v732
      %v779 = vpack.c.b16 %v737, %v735
      %v780 = vpack.c.b16 %v738, %v736
      %v781 = vpack.c.b16 %v741, %v739
      %v782 = vpack.c.b16 %v742, %v740
      %v783 = vpack.c.b16 %v745, %v743
      %v784 = vpack.c.b16 %v746, %v744
      %v785 = vpack.c.b16 %v749, %v747
      %v786 = vpack.c.b16 %v750, %v748
      %v787 = vpack.c.b16 %v753, %v751
      %v788 = vpack.c.b16 %v754, %v752
      %v789 = vpack.c.b16 %v757, %v755
      %v790 = vpack.c.b16 %v758, %v756
      %823 = vmatprep.subr.bf16.mxu0 %v774
      %824 = vmatpush1.bf16.msra.mxu0 %v773
      %825 = vmatprep.subr.bf16.mxu0 %v772
      %826 = vmatpush1.bf16.msra.mxu0 %v771
      %827 = vmatprep.subr.bf16.mxu0 %v770
      %828 = vmatpush1.bf16.msra.mxu0 %v769
      %829 = vmatprep.subr.bf16.mxu0 %v768
      %830 = vmatpush1.bf16.msra.mxu0 %v767
      %831 = vmatprep.subr.bf16.mxu0 %v766
      %832 = vmatpush1.bf16.msra.mxu0 %v765
      %833 = vmatprep.subr.bf16.mxu0 %v764
      %834 = vmatpush1.bf16.msra.mxu0 %v763
      %835 = vmatprep.subr.bf16.mxu0 %v762
      %836 = vmatpush1.bf16.msra.mxu0 %v761
      %837 = vmatprep.subr.bf16.mxu0 %v760
      %838 = vmatpush1.bf16.msra.mxu0 %v759
      %839 = vmatprep.subr.bf16.mxu0 %v790
      %840 = vmatpush2.bf16.msra.mxu0 %v789
      %841 = vmatprep.subr.bf16.mxu0 %v788
      %842 = vmatpush2.bf16.msra.mxu0 %v787
      %843 = vmatprep.subr.bf16.mxu0 %v786
      %844 = vmatpush2.bf16.msra.mxu0 %v785
      %845 = vmatprep.subr.bf16.mxu0 %v784
      %846 = vmatpush2.bf16.msra.mxu0 %v783
      %847 = vmatprep.subr.bf16.mxu0 %v782
      %848 = vmatpush2.bf16.msra.mxu0 %v781
      %849 = vmatprep.subr.bf16.mxu0 %v780
      %850 = vmatpush2.bf16.msra.mxu0 %v779
      %851 = vmatprep.subr.bf16.mxu0 %v778
      %852 = vmatpush2.bf16.msra.mxu0 %v777
      %853 = vmatprep.subr.bf16.mxu0 %v776
      %854 = vmatpush2.bf16.msra.mxu0 %v775
      %855 = vmatprep.mubr.bf16.mxu0 %v428
      %856 = vmatmul.mubr.bf16.gmra.mxu0 %v427
      %v857 = vpop.f32.mrf.mxu0
      %v858 = vadd.f32 %v653, %v857
      %v859 = vpop.f32.mrf.mxu0
      %v860 = vadd.f32 %v655, %v859
      %v861 = vpop.f32.mrf.mxu0
      %v862 = vadd.f32 %v657, %v861
      %v863 = vpop.f32.mrf.mxu0
      %v864 = vadd.f32 %v659, %v863
      %865 = vdwg.mxu0
      %v866 = vld [vmem:[#allocation2] sm:$0xee]
      %s867 = scalar_lea.vmem %s3, 512
      %v868 = vld [vmem:[%s867] sm:$0xff]
      %v869 = vld [vmem:[%s867 + $0x8] sm:$0xff]
      %v870 = vld [vmem:[%s867 + $0x10] sm:$0xff]
      %v871 = vld [vmem:[%s867 + $0x18] sm:$0xff]
      %v872 = vld [vmem:[%s867 + $0x20] sm:$0xff]
      %v873 = vld [vmem:[%s867 + $0x28] sm:$0xff]
      %v874 = vld [vmem:[%s867 + $0x30] sm:$0xff]
      %v875 = vld [vmem:[%s867 + $0x38] sm:$0xff]
      %v876 = vld [vmem:[%s867 + $0x40] sm:$0xff]
      %v877 = vld [vmem:[%s867 + $0x48] sm:$0xff]
      %v878 = vld [vmem:[%s867 + $0x50] sm:$0xff]
      %v879 = vld [vmem:[%s867 + $0x58] sm:$0xff]
      %v880 = vld [vmem:[%s867 + $0x60] sm:$0xff]
      %v881 = vld [vmem:[%s867 + $0x68] sm:$0xff]
      %v882 = vld [vmem:[%s867 + $0x70] sm:$0xff]
      %v883 = vld [vmem:[%s867 + $0x78] sm:$0xff]
      %v884 = vld [vmem:[%s867 + $0x80] sm:$0xff]
      %v885 = vld [vmem:[%s867 + $0x88] sm:$0xff]
      %v886 = vld [vmem:[%s867 + $0x90] sm:$0xff]
      %v887 = vld [vmem:[%s867 + $0x98] sm:$0xff]
      %v888 = vld [vmem:[%s867 + $0xa0] sm:$0xff]
      %v889 = vld [vmem:[%s867 + $0xa8] sm:$0xff]
      %v890 = vld [vmem:[%s867 + $0xb0] sm:$0xff]
      %v891 = vld [vmem:[%s867 + $0xb8] sm:$0xff]
      %v892 = vld [vmem:[%s867 + $0xc0] sm:$0xff]
      %v893 = vld [vmem:[%s867 + $0xc8] sm:$0xff]
      %v894 = vld [vmem:[%s867 + $0xd0] sm:$0xff]
      %v895 = vld [vmem:[%s867 + $0xd8] sm:$0xff]
      %v896 = vld [vmem:[%s867 + $0xe0] sm:$0xff]
      %v897 = vld [vmem:[%s867 + $0xe8] sm:$0xff]
      %v898 = vld [vmem:[%s867 + $0xf0] sm:$0xff]
      %v899 = vld [vmem:[%s867 + $0xf8] sm:$0xff]
      %v901 = vunpack.c.l.b16 %v866
      %v902 = vunpack.c.h.b16 %v866
      %v903 = vpack.c.b16 %v423, %v901
      %v904 = vpack.c.b16 %v424, %v902
      %vm905 = vcmask 1046528
      %v906 = vrot.slane %v903, 1
      %v907 = vrot.slane %v429, 1
      %v908 = vsel %vm905, %v906, %v907
      %v909 = vrot.slane %v904, 1
      %v910 = vrot.slane %v430, 1
      %v911 = vsel %vm905, %v909, %v910
      %v946 = vunpack.c.l.b16 %v868
      %v947 = vunpack.c.h.b16 %v868
      %v948 = vunpack.c.l.b16 %v869
      %v949 = vunpack.c.h.b16 %v869
      %v950 = vunpack.c.l.b16 %v870
      %v951 = vunpack.c.h.b16 %v870
      %v952 = vunpack.c.l.b16 %v871
      %v953 = vunpack.c.h.b16 %v871
      %v954 = vunpack.c.l.b16 %v872
      %v955 = vunpack.c.h.b16 %v872
      %v956 = vunpack.c.l.b16 %v873
      %v957 = vunpack.c.h.b16 %v873
      %v958 = vunpack.c.l.b16 %v874
      %v959 = vunpack.c.h.b16 %v874
      %v960 = vunpack.c.l.b16 %v875
      %v961 = vunpack.c.h.b16 %v875
      %v962 = vunpack.c.l.b16 %v876
      %v963 = vunpack.c.h.b16 %v876
      %v964 = vunpack.c.l.b16 %v877
      %v965 = vunpack.c.h.b16 %v877
      %v966 = vunpack.c.l.b16 %v878
      %v967 = vunpack.c.h.b16 %v878
      %v968 = vunpack.c.l.b16 %v879
      %v969 = vunpack.c.h.b16 %v879
      %v970 = vunpack.c.l.b16 %v880
      %v971 = vunpack.c.h.b16 %v880
      %v972 = vunpack.c.l.b16 %v881
      %v973 = vunpack.c.h.b16 %v881
      %v974 = vunpack.c.l.b16 %v882
      %v975 = vunpack.c.h.b16 %v882
      %v976 = vunpack.c.l.b16 %v883
      %v977 = vunpack.c.h.b16 %v883
      %v978 = vunpack.c.l.b16 %v884
      %v979 = vunpack.c.h.b16 %v884
      %v980 = vunpack.c.l.b16 %v885
      %v981 = vunpack.c.h.b16 %v885
      %v982 = vunpack.c.l.b16 %v886
      %v983 = vunpack.c.h.b16 %v886
      %v984 = vunpack.c.l.b16 %v887
      %v985 = vunpack.c.h.b16 %v887
      %v986 = vunpack.c.l.b16 %v888
      %v987 = vunpack.c.h.b16 %v888
      %v988 = vunpack.c.l.b16 %v889
      %v989 = vunpack.c.h.b16 %v889
      %v990 = vunpack.c.l.b16 %v890
      %v991 = vunpack.c.h.b16 %v890
      %v992 = vunpack.c.l.b16 %v891
      %v993 = vunpack.c.h.b16 %v891
      %v994 = vunpack.c.l.b16 %v892
      %v995 = vunpack.c.h.b16 %v892
      %v996 = vunpack.c.l.b16 %v893
      %v997 = vunpack.c.h.b16 %v893
      %v998 = vunpack.c.l.b16 %v894
      %v999 = vunpack.c.h.b16 %v894
      %v1000 = vunpack.c.l.b16 %v895
      %v1001 = vunpack.c.h.b16 %v895
      %v1002 = vunpack.c.l.b16 %v896
      %v1003 = vunpack.c.h.b16 %v896
      %v1004 = vunpack.c.l.b16 %v897
      %v1005 = vunpack.c.h.b16 %v897
      %v1006 = vunpack.c.l.b16 %v898
      %v1007 = vunpack.c.h.b16 %v898
      %v1008 = vunpack.c.l.b16 %v899
      %v1009 = vunpack.c.h.b16 %v899
      %v1010 = vpack.c.b16 %v948, %v946
      %v1011 = vpack.c.b16 %v949, %v947
      %v1012 = vpack.c.b16 %v952, %v950
      %v1013 = vpack.c.b16 %v953, %v951
      %v1014 = vpack.c.b16 %v956, %v954
      %v1015 = vpack.c.b16 %v957, %v955
      %v1016 = vpack.c.b16 %v960, %v958
      %v1017 = vpack.c.b16 %v961, %v959
      %v1018 = vpack.c.b16 %v964, %v962
      %v1019 = vpack.c.b16 %v965, %v963
      %v1020 = vpack.c.b16 %v968, %v966
      %v1021 = vpack.c.b16 %v969, %v967
      %v1022 = vpack.c.b16 %v972, %v970
      %v1023 = vpack.c.b16 %v973, %v971
      %v1024 = vpack.c.b16 %v976, %v974
      %v1025 = vpack.c.b16 %v977, %v975
      %v1026 = vpack.c.b16 %v980, %v978
      %v1027 = vpack.c.b16 %v981, %v979
      %v1028 = vpack.c.b16 %v984, %v982
      %v1029 = vpack.c.b16 %v985, %v983
      %v1030 = vpack.c.b16 %v988, %v986
      %v1031 = vpack.c.b16 %v989, %v987
      %v1032 = vpack.c.b16 %v992, %v990
      %v1033 = vpack.c.b16 %v993, %v991
      %v1034 = vpack.c.b16 %v996, %v994
      %v1035 = vpack.c.b16 %v997, %v995
      %v1036 = vpack.c.b16 %v1000, %v998
      %v1037 = vpack.c.b16 %v1001, %v999
      %v1038 = vpack.c.b16 %v1004, %v1002
      %v1039 = vpack.c.b16 %v1005, %v1003
      %v1040 = vpack.c.b16 %v1008, %v1006
      %v1041 = vpack.c.b16 %v1009, %v1007
      %1074 = vmatprep.subr.bf16.mxu0 %v1025
      %1075 = vmatpush1.bf16.msra.mxu0 %v1024
      %1076 = vmatprep.subr.bf16.mxu0 %v1023
      %1077 = vmatpush1.bf16.msra.mxu0 %v1022
      %1078 = vmatprep.subr.bf16.mxu0 %v1021
      %1079 = vmatpush1.bf16.msra.mxu0 %v1020
      %1080 = vmatprep.subr.bf16.mxu0 %v1019
      %1081 = vmatpush1.bf16.msra.mxu0 %v1018
      %1082 = vmatprep.subr.bf16.mxu0 %v1017
      %1083 = vmatpush1.bf16.msra.mxu0 %v1016
      %1084 = vmatprep.subr.bf16.mxu0 %v1015
      %1085 = vmatpush1.bf16.msra.mxu0 %v1014
      %1086 = vmatprep.subr.bf16.mxu0 %v1013
      %1087 = vmatpush1.bf16.msra.mxu0 %v1012
      %1088 = vmatprep.subr.bf16.mxu0 %v1011
      %1089 = vmatpush1.bf16.msra.mxu0 %v1010
      %1090 = vmatprep.subr.bf16.mxu0 %v1041
      %1091 = vmatpush2.bf16.msra.mxu0 %v1040
      %1092 = vmatprep.subr.bf16.mxu0 %v1039
      %1093 = vmatpush2.bf16.msra.mxu0 %v1038
      %1094 = vmatprep.subr.bf16.mxu0 %v1037
      %1095 = vmatpush2.bf16.msra.mxu0 %v1036
      %1096 = vmatprep.subr.bf16.mxu0 %v1035
      %1097 = vmatpush2.bf16.msra.mxu0 %v1034
      %1098 = vmatprep.subr.bf16.mxu0 %v1033
      %1099 = vmatpush2.bf16.msra.mxu0 %v1032
      %1100 = vmatprep.subr.bf16.mxu0 %v1031
      %1101 = vmatpush2.bf16.msra.mxu0 %v1030
      %1102 = vmatprep.subr.bf16.mxu0 %v1029
      %1103 = vmatpush2.bf16.msra.mxu0 %v1028
      %1104 = vmatprep.subr.bf16.mxu0 %v1027
      %1105 = vmatpush2.bf16.msra.mxu0 %v1026
      %1106 = vmatprep.mubr.bf16.mxu0 %v911
      %1107 = vmatmul.mubr.bf16.gmra.mxu0 %v908
      %v1108 = vpop.f32.mrf.mxu0
      %v1109 = vadd.f32 0.0, %v1108
      %v1110 = vpop.f32.mrf.mxu0
      %v1111 = vadd.f32 0.0, %v1110
      %v1112 = vpop.f32.mrf.mxu0
      %v1113 = vadd.f32 0.0, %v1112
      %v1114 = vpop.f32.mrf.mxu0
      %v1115 = vadd.f32 0.0, %v1114
      %1116 = vdwg.mxu0
      %v1117 = vadd.f32 %v858, %v1109
      %v1118 = vadd.f32 %v860, %v1111
      %v1119 = vadd.f32 %v862, %v1113
      %v1120 = vadd.f32 %v864, %v1115
      %v1121 = vld [vmem:[%s239] sm:$0xff]
      %v1122 = vld [vmem:[%s239 + $0x8] sm:$0xff]
      %v1123 = vld [vmem:[%s239 + $0x10] sm:$0xff]
      %v1124 = vld [vmem:[%s239 + $0x18] sm:$0xff]
      %v1125 = vadd.f32 %v1117, %v1121
      %v1126 = vadd.f32 %v1118, %v1122
      %v1127 = vadd.f32 %v1119, %v1123
      %v1128 = vadd.f32 %v1120, %v1124
      %1129 = vst [vmem:[%s244] sm:$0xff] %v1125
      %1130 = vst [vmem:[%s244 + $0x8] sm:$0xff] %v1126
      %1131 = vst [vmem:[%s244 + $0x10] sm:$0xff] %v1127
      %1132 = vst [vmem:[%s244 + $0x18] sm:$0xff] %v1128
      %p1133 = scmp.lt.s32.totalorder %s16, 1
      %s1134 = scalar_select %p1133, %s16, 1
      %s1135 = smul.addr %s1134, 4
      %s1136 = smul.addr %s1135, 8
      %s1137 = scalar_lea.vmem %s5, %s1136
      // Predicated region
      $region41: #{wide_basic_block.3} parent=39 // pred_check
        %p1138 = pneg %p149
      $region42: #{wide_basic_block.3} parent=39 // pred_check_branch
        %1140 = sbr.rel (%p1138) target = $region44
      $region43: #{wide_basic_block.3} parent=39 // pred_region
        _
      $region44: #{wide_basic_block.3} parent=39 // pred_fallthru
        _
    $region40: #{wide_basic_block.3} parent=5 // pred_fallthru
      _
    %p1141 = scmp.le.s32.totalorder 2, %s11
    // Predicated region
    $region45: #{wide_basic_block.3} parent=5 // pred_check
      %p1142 = pneg %p1141
    $region46: #{wide_basic_block.3} parent=5 // pred_check_branch
      %1144 = sbr.rel (%p1142) target = $region48
    $region47: #{wide_basic_block.3} parent=5 // pred_region
      %s1145 = ssub.s32 %s11, 2
      // Predicated region
      $region49: #{wide_basic_block.3} parent=47 // pred_check
        %p1146 = pneg %p155
      $region50: #{wide_basic_block.3} parent=47 // pred_check_branch
        %1148 = sbr.rel (%p1146) target = $region52
      $region51: #{wide_basic_block.3} parent=47 // pred_region
        %p1149 = scmp.lt.s32.totalorder %s17, 1
        %s1150 = scalar_select %p1149, %s17, 1
        %s1151 = smul.addr %s1150, 4
        %s1152 = smul.addr %s1151, 8
        %s1153 = scalar_lea.vmem %s5, %s1152
      $region52: #{wide_basic_block.3} parent=47 // pred_fallthru
        _
    $region48: #{wide_basic_block.3} parent=5 // pred_fallthru
      _
  $region6: #{wide_basic_block.3} parent=0 // loop_footer
    %s15 = sadd.s32 1, %s11
  $region7: #{wide_basic_block.3} parent=0 // loop_footer_branch
    %10 = sbr.rel target = $region3
  $region8: #{wide_basic_block.3} parent=0 // loop_exit
    _

</llo_original>
